<compile_context>
chip_gen: v7x
topology: tpu7x:2x2x1
jax: 0.10.0
libtpu: 0.0.40
codegen_flags: <defaults>
</compile_context>

<pallas_src>
import math

import jax
import jax.numpy as jnp
from jax.experimental import pallas as pl
from jax.experimental.pallas import tpu as pltpu

# ----------------------------- model config ---------------------------------
INPUT_DIM = 9
D_MODEL = 64
NHEAD = 4
HEAD_DIM = D_MODEL // NHEAD
DIM_FF = 2048          # nn.TransformerEncoderLayer default dim_feedforward
LN_EPS = 1e-5

B = 2                  # batch  (== attention sequence length S); kernel assumes S == 2
L = 8                  # seq    (== attention batch N)


def _layernorm(x, gamma, beta):
    mean = jnp.mean(x, axis=-1, keepdims=True)
    var = jnp.mean((x - mean) ** 2, axis=-1, keepdims=True)
    return (x - mean) * jax.lax.rsqrt(var + LN_EPS) * gamma + beta


def _stable_sigmoid(x):
    # numerically stable sigmoid using only exp / where / divide (VPU + EUP)
    ex = jnp.exp(-jnp.abs(x))
    return jnp.where(x >= 0.0, 1.0 / (1.0 + ex), ex / (1.0 + ex))


def transformer_kernel(
    x_ref, pe_ref, seg_ref, segT_ref,
    enc_w_ref, enc_b_ref,
    qkv_w_ref, qkv_b_ref,
    out_w_ref, out_b_ref,
    ln1_g_ref, ln1_b_ref,
    ff1_w_ref, ff1_b_ref, ff2_w_ref, ff2_b_ref,
    ln2_g_ref, ln2_b_ref,
    dec_w_ref, dec_b_ref,
    out_ref,
):
    f32 = jnp.float32
    N = L
    scale = 1.0 / math.sqrt(HEAD_DIM)

    # --- input projection (encoder Linear) + positional encoding ------------
    x = x_ref[...]                                                    # (B*L, 9)
    h = jnp.dot(x, enc_w_ref[...], preferred_element_type=f32) + enc_b_ref[...]
    h = h + pe_ref[...]                                               # (B*L, 64)

    # --- fused QKV projection (single 192-lane-wide MXU matmul) -------------
    qkv = (jnp.dot(h, qkv_w_ref[...], preferred_element_type=f32)
           + qkv_b_ref[...])                                          # (B*L, 192)
    q = qkv[:, 0:D_MODEL]
    k = qkv[:, D_MODEL:2 * D_MODEL]
    v = qkv[:, 2 * D_MODEL:3 * D_MODEL]

    # --- multi-head self-attention over the S = batch axis (S == 2) ---------
    seg = seg_ref[...]                                                # (64, 4)  0/1 head membership
    segT = segT_ref[...]                                              # (4, 64)

    q0, q1 = q[0:N, :], q[N:2 * N, :]
    k0, k1 = k[0:N, :], k[N:2 * N, :]
    v0, v1 = v[0:N, :], v[N:2 * N, :]

    # per-head score: elementwise q*k on full 64-lane slab, segment-sum on MXU
    prods = jnp.concatenate([q0 * k0, q0 * k1, q1 * k0, q1 * k1], axis=0)   # (4N, 64)
    sc = jnp.dot(prods, seg, preferred_element_type=f32) * scale           # (4N, 4)
    sc00, sc01 = sc[0:N, :], sc[N:2 * N, :]
    sc10, sc11 = sc[2 * N:3 * N, :], sc[3 * N:4 * N, :]

    # S == 2 softmax specialized to a sigmoid
    w01 = _stable_sigmoid(sc01 - sc00)
    w00 = 1.0 - w01
    w11 = _stable_sigmoid(sc11 - sc10)
    w10 = 1.0 - w11

    # broadcast per-head weights back to 64 lanes via the transposed segment matrix
    wcat = jnp.concatenate([w00, w01, w10, w11], axis=0)                    # (4N, 4)
    wb = jnp.dot(wcat, segT, preferred_element_type=f32)                    # (4N, 64)
    attn = jnp.concatenate(
        [wb[0:N, :] * v0 + wb[N:2 * N, :] * v1,
         wb[2 * N:3 * N, :] * v0 + wb[3 * N:4 * N, :] * v1],
        axis=0)                                                             # (B*L, 64)

    attn = (jnp.dot(attn, out_w_ref[...], preferred_element_type=f32)
            + out_b_ref[...])                                               # (B*L, 64)

    # --- residual + LayerNorm 1 ----------------------------------------------
    h = _layernorm(h + attn, ln1_g_ref[...], ln1_b_ref[...])

    # --- feed-forward (Linear -> ReLU -> Linear), bf16 MXU operands ----------
    ff = (jnp.dot(h.astype(jnp.bfloat16), ff1_w_ref[...],
                  preferred_element_type=f32) + ff1_b_ref[...])
    ff = jnp.maximum(ff, 0.0)
    ff = (jnp.dot(ff.astype(jnp.bfloat16), ff2_w_ref[...],
                  preferred_element_type=f32) + ff2_b_ref[...])

    # --- residual + LayerNorm 2 ----------------------------------------------
    h = _layernorm(h + ff, ln2_g_ref[...], ln2_b_ref[...])

    # --- decoder on x[:, -1, :]  (only the B needed rows) ---------------------
    h_last = jnp.concatenate(
        [h[b * L + (L - 1): b * L + L, :] for b in range(B)], axis=0)       # (B, 64)
    out_ref[...] = (jnp.dot(h_last, dec_w_ref[...], preferred_element_type=f32)
                    + dec_b_ref[...])                                       # (B, 1)


def make_params(key):
    """Deterministic synthetic parameters (PyTorch Linear weights pre-transposed
    to (in, out); biases reshaped to (1, out))."""
    ks = jax.random.split(key, 16)
    s = 0.05
    p = {}
    p["enc_w"] = jax.random.normal(ks[0], (INPUT_DIM, D_MODEL), jnp.float32) * s
    p["enc_b"] = jax.random.normal(ks[1], (1, D_MODEL), jnp.float32) * s
    # MHA in_proj split into q / k / v
    p["q_w"] = jax.random.normal(ks[2], (D_MODEL, D_MODEL), jnp.float32) * s
    p["k_w"] = jax.random.normal(ks[3], (D_MODEL, D_MODEL), jnp.float32) * s
    p["v_w"] = jax.random.normal(ks[4], (D_MODEL, D_MODEL), jnp.float32) * s
    p["q_b"] = jax.random.normal(ks[5], (1, D_MODEL), jnp.float32) * s
    p["k_b"] = jax.random.normal(ks[6], (1, D_MODEL), jnp.float32) * s
    p["v_b"] = jax.random.normal(ks[7], (1, D_MODEL), jnp.float32) * s
    p["out_w"] = jax.random.normal(ks[8], (D_MODEL, D_MODEL), jnp.float32) * s
    p["out_b"] = jnp.zeros((1, D_MODEL), jnp.float32)
    p["ln1_g"] = jnp.ones((1, D_MODEL), jnp.float32)
    p["ln1_b"] = jnp.zeros((1, D_MODEL), jnp.float32)
    p["ff1_w"] = jax.random.normal(ks[9], (D_MODEL, DIM_FF), jnp.float32) * s
    p["ff1_b"] = jax.random.normal(ks[10], (1, DIM_FF), jnp.float32) * s
    p["ff2_w"] = jax.random.normal(ks[11], (DIM_FF, D_MODEL), jnp.float32) * s
    p["ff2_b"] = jax.random.normal(ks[12], (1, D_MODEL), jnp.float32) * s
    p["ln2_g"] = jnp.ones((1, D_MODEL), jnp.float32)
    p["ln2_b"] = jnp.zeros((1, D_MODEL), jnp.float32)
    p["dec_w"] = jax.random.normal(ks[13], (D_MODEL, 1), jnp.float32) * s
    p["dec_b"] = jax.random.normal(ks[14], (1, 1), jnp.float32) * s
    return p


def positional_encoding_table(max_len, d_model):
    position = jnp.arange(max_len, dtype=jnp.float32)[:, None]
    div_term = jnp.exp(
        jnp.arange(0, d_model, 2, dtype=jnp.float32) * (-math.log(10000.0) / d_model))
    pe = jnp.zeros((max_len, d_model), jnp.float32)
    pe = pe.at[:, 0::2].set(jnp.sin(position * div_term))
    pe = pe.at[:, 1::2].set(jnp.cos(position * div_term))
    return pe                                                        # (max_len, d_model)


def transformer_forward(x, params):
    """x: (B, L, INPUT_DIM) float32 -> (B, 1) float32."""
    b, l, _ = x.shape
    assert (b, l) == (B, L)
    assert B == 2, "attention softmax is specialized for S == 2"

    # glue: flatten rows, build the per-batch-index positional encoding slab
    x_flat = x.reshape(B * L, INPUT_DIM)
    pe = positional_encoding_table(B, D_MODEL)                       # pe[:x.size(0)]
    pe_flat = jnp.broadcast_to(pe[:, None, :], (B, L, D_MODEL)).reshape(B * L, D_MODEL)

    # constant 0/1 head-membership matrix for segment-sum / broadcast on MXU
    head_ids = jnp.arange(D_MODEL, dtype=jnp.int32) // HEAD_DIM
    seg = (head_ids[:, None] == jnp.arange(NHEAD, dtype=jnp.int32)[None, :]
           ).astype(jnp.float32)                                     # (64, 4)
    segT = seg.T                                                     # (4, 64)

    # fused QKV weights / biases; FF weights in bf16 (dominant HBM traffic)
    qkv_w = jnp.concatenate([params["q_w"], params["k_w"], params["v_w"]], axis=1)
    qkv_b = jnp.concatenate([params["q_b"], params["k_b"], params["v_b"]], axis=1)
    ff1_w = params["ff1_w"].astype(jnp.bfloat16)
    ff2_w = params["ff2_w"].astype(jnp.bfloat16)

    args = [
        x_flat, pe_flat, seg, segT,
        params["enc_w"], params["enc_b"],
        qkv_w, qkv_b,
        params["out_w"], params["out_b"],
        params["ln1_g"], params["ln1_b"],
        ff1_w, params["ff1_b"], ff2_w, params["ff2_b"],
        params["ln2_g"], params["ln2_b"],
        params["dec_w"], params["dec_b"],
    ]

    vmem_spec = pl.BlockSpec(memory_space=pltpu.MemorySpace.VMEM)
    return pl.pallas_call(
        transformer_kernel,
        out_shape=jax.ShapeDtypeStruct((B, 1), jnp.float32),
        in_specs=[vmem_spec] * len(args),
        out_specs=vmem_spec,
    )(*args)


if __name__ == "__main__":
    key = jax.random.PRNGKey(0)
    k_x, k_p = jax.random.split(key)
    x = jax.random.normal(k_x, (B, L, INPUT_DIM), jnp.float32)
    params = make_params(k_p)

    out = transformer_forward(x, params)
    out = jax.block_until_ready(out)

    assert out.shape == (B, 1), out.shape
    assert bool(jnp.all(jnp.isfinite(out))), "non-finite output"
    print("KERNEL_OK")
</pallas_src>

<mosaic_0001>
module attributes {stable_mosaic.version = 11 : i64} {
  func.func @transformer_kernel(%arg0: memref<16x9xf32, #tpu.memory_space<vmem>>, %arg1: memref<16x64xf32, #tpu.memory_space<vmem>>, %arg2: memref<64x4xf32, #tpu.memory_space<vmem>>, %arg3: memref<4x64xf32, #tpu.memory_space<vmem>>, %arg4: memref<9x64xf32, #tpu.memory_space<vmem>>, %arg5: memref<1x64xf32, #tpu.memory_space<vmem>>, %arg6: memref<64x192xf32, #tpu.memory_space<vmem>>, %arg7: memref<1x192xf32, #tpu.memory_space<vmem>>, %arg8: memref<64x64xf32, #tpu.memory_space<vmem>>, %arg9: memref<1x64xf32, #tpu.memory_space<vmem>>, %arg10: memref<1x64xf32, #tpu.memory_space<vmem>>, %arg11: memref<1x64xf32, #tpu.memory_space<vmem>>, %arg12: memref<64x2048xbf16, #tpu.memory_space<vmem>>, %arg13: memref<1x2048xf32, #tpu.memory_space<vmem>>, %arg14: memref<2048x64xbf16, #tpu.memory_space<vmem>>, %arg15: memref<1x64xf32, #tpu.memory_space<vmem>>, %arg16: memref<1x64xf32, #tpu.memory_space<vmem>>, %arg17: memref<1x64xf32, #tpu.memory_space<vmem>>, %arg18: memref<64x1xf32, #tpu.memory_space<vmem>>, %arg19: memref<1x1xf32, #tpu.memory_space<vmem>>, %arg20: memref<2x1xf32, #tpu.memory_space<vmem>>) attributes {dimension_semantics = [], scalar_prefetch = 0 : i64, scratch_operands = 0 : i64, tpu.core_type = #tpu.core_type<tc>} {
    %c0 = arith.constant 0 : index
    %c0_0 = arith.constant 0 : index
    %0 = vector.load %arg0[%c0, %c0_0] : memref<16x9xf32, #tpu.memory_space<vmem>>, vector<16x9xf32>
    %c0_1 = arith.constant 0 : index
    %c0_2 = arith.constant 0 : index
    %1 = vector.load %arg4[%c0_1, %c0_2] : memref<9x64xf32, #tpu.memory_space<vmem>>, vector<9x64xf32>
    %cst = arith.constant dense<0.000000e+00> : vector<16x64xf32>
    %2 = tpu.matmul %0, %1, %cst {dimension_numbers = #tpu.dot_dimension_numbers<[1], [0], [0], [1], [0, 0, 1, 1], [], []>} : vector<16x9xf32>, vector<9x64xf32>, vector<16x64xf32> -> vector<16x64xf32>
    %c0_3 = arith.constant 0 : index
    %c0_4 = arith.constant 0 : index
    %3 = vector.load %arg5[%c0_3, %c0_4] : memref<1x64xf32, #tpu.memory_space<vmem>>, vector<1x64xf32>
    %4 = vector.broadcast %3 : vector<1x64xf32> to vector<16x64xf32>
    %5 = arith.addf %2, %4 : vector<16x64xf32>
    %c0_5 = arith.constant 0 : index
    %c0_6 = arith.constant 0 : index
    %6 = vector.load %arg1[%c0_5, %c0_6] : memref<16x64xf32, #tpu.memory_space<vmem>>, vector<16x64xf32>
    %7 = arith.addf %5, %6 : vector<16x64xf32>
    %c0_7 = arith.constant 0 : index
    %c0_8 = arith.constant 0 : index
    %8 = vector.load %arg6[%c0_7, %c0_8] : memref<64x192xf32, #tpu.memory_space<vmem>>, vector<64x192xf32>
    %cst_9 = arith.constant dense<0.000000e+00> : vector<16x192xf32>
    %9 = tpu.matmul %7, %8, %cst_9 {dimension_numbers = #tpu.dot_dimension_numbers<[1], [0], [0], [1], [0, 0, 1, 1], [], []>} : vector<16x64xf32>, vector<64x192xf32>, vector<16x192xf32> -> vector<16x192xf32>
    %c0_10 = arith.constant 0 : index
    %c0_11 = arith.constant 0 : index
    %10 = vector.load %arg7[%c0_10, %c0_11] : memref<1x192xf32, #tpu.memory_space<vmem>>, vector<1x192xf32>
    %11 = vector.broadcast %10 : vector<1x192xf32> to vector<16x192xf32>
    %12 = arith.addf %9, %11 : vector<16x192xf32>
    %13 = vector.extract_strided_slice %12 {offsets = [0, 0], sizes = [16, 64], strides = [1, 1]} : vector<16x192xf32> to vector<16x64xf32>
    %14 = vector.extract_strided_slice %12 {offsets = [0, 64], sizes = [16, 64], strides = [1, 1]} : vector<16x192xf32> to vector<16x64xf32>
    %15 = vector.extract_strided_slice %12 {offsets = [0, 128], sizes = [16, 64], strides = [1, 1]} : vector<16x192xf32> to vector<16x64xf32>
    %c0_12 = arith.constant 0 : index
    %c0_13 = arith.constant 0 : index
    %16 = vector.load %arg2[%c0_12, %c0_13] : memref<64x4xf32, #tpu.memory_space<vmem>>, vector<64x4xf32>
    %c0_14 = arith.constant 0 : index
    %c0_15 = arith.constant 0 : index
    %17 = vector.load %arg3[%c0_14, %c0_15] : memref<4x64xf32, #tpu.memory_space<vmem>>, vector<4x64xf32>
    %18 = vector.extract_strided_slice %13 {offsets = [0, 0], sizes = [8, 64], strides = [1, 1]} : vector<16x64xf32> to vector<8x64xf32>
    %19 = vector.extract_strided_slice %13 {offsets = [8, 0], sizes = [8, 64], strides = [1, 1]} : vector<16x64xf32> to vector<8x64xf32>
    %20 = vector.extract_strided_slice %14 {offsets = [0, 0], sizes = [8, 64], strides = [1, 1]} : vector<16x64xf32> to vector<8x64xf32>
    %21 = vector.extract_strided_slice %14 {offsets = [8, 0], sizes = [8, 64], strides = [1, 1]} : vector<16x64xf32> to vector<8x64xf32>
    %22 = vector.extract_strided_slice %15 {offsets = [0, 0], sizes = [8, 64], strides = [1, 1]} : vector<16x64xf32> to vector<8x64xf32>
    %23 = vector.extract_strided_slice %15 {offsets = [8, 0], sizes = [8, 64], strides = [1, 1]} : vector<16x64xf32> to vector<8x64xf32>
    %24 = arith.mulf %18, %20 : vector<8x64xf32>
    %25 = arith.mulf %18, %21 : vector<8x64xf32>
    %26 = arith.mulf %19, %20 : vector<8x64xf32>
    %27 = arith.mulf %19, %21 : vector<8x64xf32>
    %28 = tpu.concatenate %24, %25, %26, %27 in 0 : vector<8x64xf32>, vector<8x64xf32>, vector<8x64xf32>, vector<8x64xf32> -> vector<32x64xf32>
    %cst_16 = arith.constant dense<0.000000e+00> : vector<32x4xf32>
    %29 = tpu.matmul %28, %16, %cst_16 {dimension_numbers = #tpu.dot_dimension_numbers<[1], [0], [0], [1], [0, 0, 1, 1], [], []>} : vector<32x64xf32>, vector<64x4xf32>, vector<32x4xf32> -> vector<32x4xf32>
    %cst_17 = arith.constant 2.500000e-01 : f32
    %30 = vector.broadcast %cst_17 : f32 to vector<32x4xf32>
    %31 = arith.mulf %29, %30 : vector<32x4xf32>
    %32 = vector.extract_strided_slice %31 {offsets = [0, 0], sizes = [8, 4], strides = [1, 1]} : vector<32x4xf32> to vector<8x4xf32>
    %33 = vector.extract_strided_slice %31 {offsets = [8, 0], sizes = [8, 4], strides = [1, 1]} : vector<32x4xf32> to vector<8x4xf32>
    %34 = vector.extract_strided_slice %31 {offsets = [16, 0], sizes = [8, 4], strides = [1, 1]} : vector<32x4xf32> to vector<8x4xf32>
    %35 = vector.extract_strided_slice %31 {offsets = [24, 0], sizes = [8, 4], strides = [1, 1]} : vector<32x4xf32> to vector<8x4xf32>
    %36 = arith.subf %33, %32 : vector<8x4xf32>
    %37 = math.absf %36 : vector<8x4xf32>
    %cst_18 = arith.constant 0.000000e+00 : f32
    %38 = vector.broadcast %cst_18 : f32 to vector<8x4xf32>
    %39 = arith.subf %38, %37 : vector<8x4xf32>
    %40 = math.exp %39 : vector<8x4xf32>
    %cst_19 = arith.constant 0.000000e+00 : f32
    %41 = vector.broadcast %cst_19 : f32 to vector<8x4xf32>
    %42 = arith.cmpf oge, %36, %41 : vector<8x4xf32>
    %cst_20 = arith.constant 1.000000e+00 : f32
    %43 = vector.broadcast %cst_20 : f32 to vector<8x4xf32>
    %44 = arith.addf %43, %40 : vector<8x4xf32>
    %cst_21 = arith.constant 1.000000e+00 : f32
    %45 = vector.broadcast %cst_21 : f32 to vector<8x4xf32>
    %46 = arith.divf %45, %44 : vector<8x4xf32>
    %cst_22 = arith.constant 1.000000e+00 : f32
    %47 = vector.broadcast %cst_22 : f32 to vector<8x4xf32>
    %48 = arith.addf %47, %40 : vector<8x4xf32>
    %49 = arith.divf %40, %48 : vector<8x4xf32>
    %50 = arith.select %42, %46, %49 : vector<8x4xi1>, vector<8x4xf32>
    %cst_23 = arith.constant 1.000000e+00 : f32
    %51 = vector.broadcast %cst_23 : f32 to vector<8x4xf32>
    %52 = arith.subf %51, %50 : vector<8x4xf32>
    %53 = arith.subf %35, %34 : vector<8x4xf32>
    %54 = math.absf %53 : vector<8x4xf32>
    %cst_24 = arith.constant 0.000000e+00 : f32
    %55 = vector.broadcast %cst_24 : f32 to vector<8x4xf32>
    %56 = arith.subf %55, %54 : vector<8x4xf32>
    %57 = math.exp %56 : vector<8x4xf32>
    %cst_25 = arith.constant 0.000000e+00 : f32
    %58 = vector.broadcast %cst_25 : f32 to vector<8x4xf32>
    %59 = arith.cmpf oge, %53, %58 : vector<8x4xf32>
    %cst_26 = arith.constant 1.000000e+00 : f32
    %60 = vector.broadcast %cst_26 : f32 to vector<8x4xf32>
    %61 = arith.addf %60, %57 : vector<8x4xf32>
    %cst_27 = arith.constant 1.000000e+00 : f32
    %62 = vector.broadcast %cst_27 : f32 to vector<8x4xf32>
    %63 = arith.divf %62, %61 : vector<8x4xf32>
    %cst_28 = arith.constant 1.000000e+00 : f32
    %64 = vector.broadcast %cst_28 : f32 to vector<8x4xf32>
    %65 = arith.addf %64, %57 : vector<8x4xf32>
    %66 = arith.divf %57, %65 : vector<8x4xf32>
    %67 = arith.select %59, %63, %66 : vector<8x4xi1>, vector<8x4xf32>
    %cst_29 = arith.constant 1.000000e+00 : f32
    %68 = vector.broadcast %cst_29 : f32 to vector<8x4xf32>
    %69 = arith.subf %68, %67 : vector<8x4xf32>
    %70 = tpu.concatenate %52, %50, %69, %67 in 0 : vector<8x4xf32>, vector<8x4xf32>, vector<8x4xf32>, vector<8x4xf32> -> vector<32x4xf32>
    %cst_30 = arith.constant dense<0.000000e+00> : vector<32x64xf32>
    %71 = tpu.matmul %70, %17, %cst_30 {dimension_numbers = #tpu.dot_dimension_numbers<[1], [0], [0], [1], [0, 0, 1, 1], [], []>} : vector<32x4xf32>, vector<4x64xf32>, vector<32x64xf32> -> vector<32x64xf32>
    %72 = vector.extract_strided_slice %71 {offsets = [0, 0], sizes = [8, 64], strides = [1, 1]} : vector<32x64xf32> to vector<8x64xf32>
    %73 = arith.mulf %72, %22 : vector<8x64xf32>
    %74 = vector.extract_strided_slice %71 {offsets = [8, 0], sizes = [8, 64], strides = [1, 1]} : vector<32x64xf32> to vector<8x64xf32>
    %75 = arith.mulf %74, %23 : vector<8x64xf32>
    %76 = arith.addf %73, %75 : vector<8x64xf32>
    %77 = vector.extract_strided_slice %71 {offsets = [16, 0], sizes = [8, 64], strides = [1, 1]} : vector<32x64xf32> to vector<8x64xf32>
    %78 = arith.mulf %77, %22 : vector<8x64xf32>
    %79 = vector.extract_strided_slice %71 {offsets = [24, 0], sizes = [8, 64], strides = [1, 1]} : vector<32x64xf32> to vector<8x64xf32>
    %80 = arith.mulf %79, %23 : vector<8x64xf32>
    %81 = arith.addf %78, %80 : vector<8x64xf32>
    %82 = tpu.concatenate %76, %81 in 0 : vector<8x64xf32>, vector<8x64xf32> -> vector<16x64xf32>
    %c0_31 = arith.constant 0 : index
    %c0_32 = arith.constant 0 : index
    %83 = vector.load %arg8[%c0_31, %c0_32] : memref<64x64xf32, #tpu.memory_space<vmem>>, vector<64x64xf32>
    %cst_33 = arith.constant dense<0.000000e+00> : vector<16x64xf32>
    %84 = tpu.matmul %82, %83, %cst_33 {dimension_numbers = #tpu.dot_dimension_numbers<[1], [0], [0], [1], [0, 0, 1, 1], [], []>} : vector<16x64xf32>, vector<64x64xf32>, vector<16x64xf32> -> vector<16x64xf32>
    %c0_34 = arith.constant 0 : index
    %c0_35 = arith.constant 0 : index
    %85 = vector.load %arg9[%c0_34, %c0_35] : memref<1x64xf32, #tpu.memory_space<vmem>>, vector<1x64xf32>
    %86 = vector.broadcast %85 : vector<1x64xf32> to vector<16x64xf32>
    %87 = arith.addf %84, %86 : vector<16x64xf32>
    %88 = arith.addf %7, %87 : vector<16x64xf32>
    %c0_36 = arith.constant 0 : index
    %c0_37 = arith.constant 0 : index
    %89 = vector.load %arg10[%c0_36, %c0_37] : memref<1x64xf32, #tpu.memory_space<vmem>>, vector<1x64xf32>
    %c0_38 = arith.constant 0 : index
    %c0_39 = arith.constant 0 : index
    %90 = vector.load %arg11[%c0_38, %c0_39] : memref<1x64xf32, #tpu.memory_space<vmem>>, vector<1x64xf32>
    %cst_40 = arith.constant dense<0.000000e+00> : vector<16xf32>
    %91 = vector.multi_reduction <add>, %88, %cst_40 [1] : vector<16x64xf32> to vector<16xf32>
    %92 = vector.shape_cast %91 : vector<16xf32> to vector<16x1xf32>
    %cst_41 = arith.constant 6.400000e+01 : f32
    %93 = vector.broadcast %cst_41 : f32 to vector<16x1xf32>
    %94 = arith.divf %92, %93 : vector<16x1xf32>
    %95 = vector.broadcast %94 : vector<16x1xf32> to vector<16x64xf32>
    %96 = arith.subf %88, %95 : vector<16x64xf32>
    %97 = arith.mulf %96, %96 : vector<16x64xf32>
    %cst_42 = arith.constant dense<0.000000e+00> : vector<16xf32>
    %98 = vector.multi_reduction <add>, %97, %cst_42 [1] : vector<16x64xf32> to vector<16xf32>
    %99 = vector.shape_cast %98 : vector<16xf32> to vector<16x1xf32>
    %cst_43 = arith.constant 6.400000e+01 : f32
    %100 = vector.broadcast %cst_43 : f32 to vector<16x1xf32>
    %101 = arith.divf %99, %100 : vector<16x1xf32>
    %102 = vector.broadcast %94 : vector<16x1xf32> to vector<16x64xf32>
    %103 = arith.subf %88, %102 : vector<16x64xf32>
    %cst_44 = arith.constant 9.99999974E-6 : f32
    %104 = vector.broadcast %cst_44 : f32 to vector<16x1xf32>
    %105 = arith.addf %101, %104 : vector<16x1xf32>
    %106 = math.rsqrt %105 : vector<16x1xf32>
    %107 = vector.broadcast %106 : vector<16x1xf32> to vector<16x64xf32>
    %108 = arith.mulf %103, %107 : vector<16x64xf32>
    %109 = vector.broadcast %89 : vector<1x64xf32> to vector<16x64xf32>
    %110 = arith.mulf %108, %109 : vector<16x64xf32>
    %111 = vector.broadcast %90 : vector<1x64xf32> to vector<16x64xf32>
    %112 = arith.addf %110, %111 : vector<16x64xf32>
    %113 = arith.truncf %112 : vector<16x64xf32> to vector<16x64xbf16>
    %c0_45 = arith.constant 0 : index
    %c0_46 = arith.constant 0 : index
    %114 = vector.load %arg12[%c0_45, %c0_46] : memref<64x2048xbf16, #tpu.memory_space<vmem>>, vector<64x2048xbf16>
    %cst_47 = arith.constant dense<0.000000e+00> : vector<16x2048xf32>
    %115 = tpu.matmul %113, %114, %cst_47 {dimension_numbers = #tpu.dot_dimension_numbers<[1], [0], [0], [1], [0, 0, 1, 1], [], []>} : vector<16x64xbf16>, vector<64x2048xbf16>, vector<16x2048xf32> -> vector<16x2048xf32>
    %c0_48 = arith.constant 0 : index
    %c0_49 = arith.constant 0 : index
    %116 = vector.load %arg13[%c0_48, %c0_49] : memref<1x2048xf32, #tpu.memory_space<vmem>>, vector<1x2048xf32>
    %117 = vector.broadcast %116 : vector<1x2048xf32> to vector<16x2048xf32>
    %118 = arith.addf %115, %117 : vector<16x2048xf32>
    %cst_50 = arith.constant 0.000000e+00 : f32
    %119 = vector.broadcast %cst_50 : f32 to vector<16x2048xf32>
    %120 = arith.maximumf %118, %119 : vector<16x2048xf32>
    %121 = arith.truncf %120 : vector<16x2048xf32> to vector<16x2048xbf16>
    %c0_51 = arith.constant 0 : index
    %c0_52 = arith.constant 0 : index
    %122 = vector.load %arg14[%c0_51, %c0_52] : memref<2048x64xbf16, #tpu.memory_space<vmem>>, vector<2048x64xbf16>
    %cst_53 = arith.constant dense<0.000000e+00> : vector<16x64xf32>
    %123 = tpu.matmul %121, %122, %cst_53 {dimension_numbers = #tpu.dot_dimension_numbers<[1], [0], [0], [1], [0, 0, 1, 1], [], []>} : vector<16x2048xbf16>, vector<2048x64xbf16>, vector<16x64xf32> -> vector<16x64xf32>
    %c0_54 = arith.constant 0 : index
    %c0_55 = arith.constant 0 : index
    %124 = vector.load %arg15[%c0_54, %c0_55] : memref<1x64xf32, #tpu.memory_space<vmem>>, vector<1x64xf32>
    %125 = vector.broadcast %124 : vector<1x64xf32> to vector<16x64xf32>
    %126 = arith.addf %123, %125 : vector<16x64xf32>
    %127 = arith.addf %112, %126 : vector<16x64xf32>
    %c0_56 = arith.constant 0 : index
    %c0_57 = arith.constant 0 : index
    %128 = vector.load %arg16[%c0_56, %c0_57] : memref<1x64xf32, #tpu.memory_space<vmem>>, vector<1x64xf32>
    %c0_58 = arith.constant 0 : index
    %c0_59 = arith.constant 0 : index
    %129 = vector.load %arg17[%c0_58, %c0_59] : memref<1x64xf32, #tpu.memory_space<vmem>>, vector<1x64xf32>
    %cst_60 = arith.constant dense<0.000000e+00> : vector<16xf32>
    %130 = vector.multi_reduction <add>, %127, %cst_60 [1] : vector<16x64xf32> to vector<16xf32>
    %131 = vector.shape_cast %130 : vector<16xf32> to vector<16x1xf32>
    %cst_61 = arith.constant 6.400000e+01 : f32
    %132 = vector.broadcast %cst_61 : f32 to vector<16x1xf32>
    %133 = arith.divf %131, %132 : vector<16x1xf32>
    %134 = vector.broadcast %133 : vector<16x1xf32> to vector<16x64xf32>
    %135 = arith.subf %127, %134 : vector<16x64xf32>
    %136 = arith.mulf %135, %135 : vector<16x64xf32>
    %cst_62 = arith.constant dense<0.000000e+00> : vector<16xf32>
    %137 = vector.multi_reduction <add>, %136, %cst_62 [1] : vector<16x64xf32> to vector<16xf32>
    %138 = vector.shape_cast %137 : vector<16xf32> to vector<16x1xf32>
    %cst_63 = arith.constant 6.400000e+01 : f32
    %139 = vector.broadcast %cst_63 : f32 to vector<16x1xf32>
    %140 = arith.divf %138, %139 : vector<16x1xf32>
    %141 = vector.broadcast %133 : vector<16x1xf32> to vector<16x64xf32>
    %142 = arith.subf %127, %141 : vector<16x64xf32>
    %cst_64 = arith.constant 9.99999974E-6 : f32
    %143 = vector.broadcast %cst_64 : f32 to vector<16x1xf32>
    %144 = arith.addf %140, %143 : vector<16x1xf32>
    %145 = math.rsqrt %144 : vector<16x1xf32>
    %146 = vector.broadcast %145 : vector<16x1xf32> to vector<16x64xf32>
    %147 = arith.mulf %142, %146 : vector<16x64xf32>
    %148 = vector.broadcast %128 : vector<1x64xf32> to vector<16x64xf32>
    %149 = arith.mulf %147, %148 : vector<16x64xf32>
    %150 = vector.broadcast %129 : vector<1x64xf32> to vector<16x64xf32>
    %151 = arith.addf %149, %150 : vector<16x64xf32>
    %152 = vector.extract_strided_slice %151 {offsets = [7, 0], sizes = [1, 64], strides = [1, 1]} : vector<16x64xf32> to vector<1x64xf32>
    %153 = vector.extract_strided_slice %151 {offsets = [15, 0], sizes = [1, 64], strides = [1, 1]} : vector<16x64xf32> to vector<1x64xf32>
    %154 = tpu.concatenate %152, %153 in 0 : vector<1x64xf32>, vector<1x64xf32> -> vector<2x64xf32>
    %c0_65 = arith.constant 0 : index
    %c0_66 = arith.constant 0 : index
    %155 = vector.load %arg18[%c0_65, %c0_66] : memref<64x1xf32, #tpu.memory_space<vmem>>, vector<64x1xf32>
    %cst_67 = arith.constant dense<0.000000e+00> : vector<2x1xf32>
    %156 = tpu.matmul %154, %155, %cst_67 {dimension_numbers = #tpu.dot_dimension_numbers<[1], [0], [0], [1], [0, 0, 1, 1], [], []>} : vector<2x64xf32>, vector<64x1xf32>, vector<2x1xf32> -> vector<2x1xf32>
    %c0_68 = arith.constant 0 : index
    %c0_69 = arith.constant 0 : index
    %157 = vector.load %arg19[%c0_68, %c0_69] : memref<1x1xf32, #tpu.memory_space<vmem>>, vector<1x1xf32>
    %158 = vector.broadcast %157 : vector<1x1xf32> to vector<2x1xf32>
    %159 = arith.addf %156, %158 : vector<2x1xf32>
    %c0_70 = arith.constant 0 : index
    %c0_71 = arith.constant 0 : index
    %160 = vector.load %arg20[%c0_70, %c0_71] : memref<2x1xf32, #tpu.memory_space<vmem>>, vector<2x1xf32>
    tpu.vector_store %arg20[%c0_70, %c0_71], %159 {strides = array<i32>} : memref<2x1xf32, #tpu.memory_space<vmem>>, vector<2x1xf32>,
    return
  }
}

</mosaic_0001>

<llo_original>
// kernel: tpu_custom_call.1
$region0: #{tpu_custom_call.1}
  #allocation0 [shape = 'u32[]', space=smem, size = 0x4, offset = 0x4, fixed_abs, tag = 'smem constant byte address 0x4 - core index']
  #allocation1 [shape = 'u32[144,128]{1,0:T(1,128)}', space=vmem, size = 0x12000, scoped, tag = 'internal scratch']
  #allocation2 [shape = 'f32[1,1]{1,0:T(1,128)S(1)}', space=vmem, size = 0x200, scoped, tag = 'scoped memory for tpu_custom_call.1']
  %s0 = inlined_call_operand.vmem [shape: f32[16,9], index: 0, kind: input, shape index: {}]
  %s1 = inlined_call_operand.vmem [shape: f32[16,64], index: 1, kind: input, shape index: {}]
  %s2 = inlined_call_operand.vmem [shape: f32[64,4], index: 2, kind: input, shape index: {}]
  %s3 = inlined_call_operand.vmem [shape: f32[4,64], index: 3, kind: input, shape index: {}]
  %s4 = inlined_call_operand.vmem [shape: f32[9,64], index: 4, kind: input, shape index: {}]
  %s5 = inlined_call_operand.vmem [shape: f32[1,64], index: 5, kind: input, shape index: {}]
  %s6 = inlined_call_operand.vmem [shape: f32[64,192], index: 6, kind: input, shape index: {}]
  %s7 = inlined_call_operand.vmem [shape: f32[1,192], index: 7, kind: input, shape index: {}]
  %s8 = inlined_call_operand.vmem [shape: f32[64,64], index: 8, kind: input, shape index: {}]
  %s9 = inlined_call_operand.vmem [shape: f32[1,64], index: 9, kind: input, shape index: {}]
  %s10 = inlined_call_operand.vmem [shape: f32[1,64], index: 10, kind: input, shape index: {}]
  %s11 = inlined_call_operand.vmem [shape: f32[1,64], index: 11, kind: input, shape index: {}]
  %s12 = inlined_call_operand.vmem [shape: bf16[64,2048], index: 12, kind: input, shape index: {}]
  %s13 = inlined_call_operand.vmem [shape: f32[1,2048], index: 13, kind: input, shape index: {}]
  %s14 = inlined_call_operand.vmem [shape: bf16[2048,64], index: 14, kind: input, shape index: {}]
  %s15 = inlined_call_operand.vmem [shape: f32[1,64], index: 15, kind: input, shape index: {}]
  %s16 = inlined_call_operand.vmem [shape: f32[1,64], index: 16, kind: input, shape index: {}]
  %s17 = inlined_call_operand.vmem [shape: f32[1,64], index: 17, kind: input, shape index: {}]
  %s18 = inlined_call_operand.vmem [shape: f32[64,1], index: 18, kind: input, shape index: {}]
  %s19 = inlined_call_operand.<no memory space> [shape: f32[1,1], index: 19, kind: input, shape index: {}]
  %s20 = inlined_call_operand.vmem [shape: f32[2,1], index: 20, kind: output, shape index: {}]
  %s21 = sld [smem:[#allocation0]]
  $region90: #{tpu_custom_call.1} parent=0
    _
  %s23 = ssub.s32 1, %s21
  %s24 = scalar_select 0, %s23, %s21
  %v25 = vstv %s19
  %26 = vst [vmem:[#allocation2] sm:$0x1] %v25
  // Predicated region
  $region2: #{tpu_custom_call.1} parent=0 // pred_check
    _
  $region3: #{tpu_custom_call.1} parent=0 // pred_check_branch
    %28 = sbr.rel (0) target = $region5
  $region4: #{tpu_custom_call.1} parent=0 // pred_region
    _
  $region5: #{tpu_custom_call.1} parent=0 // pred_fallthru
    _
  // Predicated region
  $region6: #{tpu_custom_call.1} parent=0 // pred_check
    _
  $region7: #{tpu_custom_call.1} parent=0 // pred_check_branch
    %30 = sbr.rel (0) target = $region9
  $region8: #{tpu_custom_call.1} parent=0 // pred_region
    _
  $region9: #{tpu_custom_call.1} parent=0 // pred_fallthru
    _
  // Predicated region
  $region10: #{tpu_custom_call.1} parent=0 // pred_check
    _
  $region11: #{tpu_custom_call.1} parent=0 // pred_check_branch
    %32 = sbr.rel (0) target = $region13
  $region12: #{tpu_custom_call.1} parent=0 // pred_region
    _
  $region13: #{tpu_custom_call.1} parent=0 // pred_fallthru
    _
  // Predicated region
  $region14: #{tpu_custom_call.1} parent=0 // pred_check
    _
  $region15: #{tpu_custom_call.1} parent=0 // pred_check_branch
    %34 = sbr.rel (0) target = $region17
  $region16: #{tpu_custom_call.1} parent=0 // pred_region
    _
  $region17: #{tpu_custom_call.1} parent=0 // pred_fallthru
    _
  // Predicated region
  $region18: #{tpu_custom_call.1} parent=0 // pred_check
    _
  $region19: #{tpu_custom_call.1} parent=0 // pred_check_branch
    %36 = sbr.rel (0) target = $region21
  $region20: #{tpu_custom_call.1} parent=0 // pred_region
    _
  $region21: #{tpu_custom_call.1} parent=0 // pred_fallthru
    _
  // Predicated region
  $region22: #{tpu_custom_call.1} parent=0 // pred_check
    _
  $region23: #{tpu_custom_call.1} parent=0 // pred_check_branch
    %38 = sbr.rel (0) target = $region25
  $region24: #{tpu_custom_call.1} parent=0 // pred_region
    _
  $region25: #{tpu_custom_call.1} parent=0 // pred_fallthru
    _
  // Predicated region
  $region26: #{tpu_custom_call.1} parent=0 // pred_check
    _
  $region27: #{tpu_custom_call.1} parent=0 // pred_check_branch
    %40 = sbr.rel (0) target = $region29
  $region28: #{tpu_custom_call.1} parent=0 // pred_region
    _
  $region29: #{tpu_custom_call.1} parent=0 // pred_fallthru
    _
  // Predicated region
  $region30: #{tpu_custom_call.1} parent=0 // pred_check
    _
  $region31: #{tpu_custom_call.1} parent=0 // pred_check_branch
    %42 = sbr.rel (0) target = $region33
  $region32: #{tpu_custom_call.1} parent=0 // pred_region
    _
  $region33: #{tpu_custom_call.1} parent=0 // pred_fallthru
    _
  // Predicated region
  $region34: #{tpu_custom_call.1} parent=0 // pred_check
    _
  $region35: #{tpu_custom_call.1} parent=0 // pred_check_branch
    %44 = sbr.rel (0) target = $region37
  $region36: #{tpu_custom_call.1} parent=0 // pred_region
    _
  $region37: #{tpu_custom_call.1} parent=0 // pred_fallthru
    _
  // Predicated region
  $region38: #{tpu_custom_call.1} parent=0 // pred_check
    _
  $region39: #{tpu_custom_call.1} parent=0 // pred_check_branch
    %46 = sbr.rel (0) target = $region41
  $region40: #{tpu_custom_call.1} parent=0 // pred_region
    _
  $region41: #{tpu_custom_call.1} parent=0 // pred_fallthru
    _
  // Predicated region
  $region42: #{tpu_custom_call.1} parent=0 // pred_check
    _
  $region43: #{tpu_custom_call.1} parent=0 // pred_check_branch
    %48 = sbr.rel (0) target = $region45
  $region44: #{tpu_custom_call.1} parent=0 // pred_region
    _
  $region45: #{tpu_custom_call.1} parent=0 // pred_fallthru
    _
  // Predicated region
  $region46: #{tpu_custom_call.1} parent=0 // pred_check
    _
  $region47: #{tpu_custom_call.1} parent=0 // pred_check_branch
    %50 = sbr.rel (0) target = $region49
  $region48: #{tpu_custom_call.1} parent=0 // pred_region
    _
  $region49: #{tpu_custom_call.1} parent=0 // pred_fallthru
    _
  // Predicated region
  $region50: #{tpu_custom_call.1} parent=0 // pred_check
    _
  $region51: #{tpu_custom_call.1} parent=0 // pred_check_branch
    %52 = sbr.rel (0) target = $region53
  $region52: #{tpu_custom_call.1} parent=0 // pred_region
    _
  $region53: #{tpu_custom_call.1} parent=0 // pred_fallthru
    _
  // Predicated region
  $region54: #{tpu_custom_call.1} parent=0 // pred_check
    _
  $region55: #{tpu_custom_call.1} parent=0 // pred_check_branch
    %54 = sbr.rel (0) target = $region57
  $region56: #{tpu_custom_call.1} parent=0 // pred_region
    _
  $region57: #{tpu_custom_call.1} parent=0 // pred_fallthru
    _
  // Predicated region
  $region58: #{tpu_custom_call.1} parent=0 // pred_check
    _
  $region59: #{tpu_custom_call.1} parent=0 // pred_check_branch
    %56 = sbr.rel (0) target = $region61
  $region60: #{tpu_custom_call.1} parent=0 // pred_region
    _
  $region61: #{tpu_custom_call.1} parent=0 // pred_fallthru
    _
  // Predicated region
  $region62: #{tpu_custom_call.1} parent=0 // pred_check
    _
  $region63: #{tpu_custom_call.1} parent=0 // pred_check_branch
    %58 = sbr.rel (0) target = $region65
  $region64: #{tpu_custom_call.1} parent=0 // pred_region
    _
  $region65: #{tpu_custom_call.1} parent=0 // pred_fallthru
    _
  // Predicated region
  $region66: #{tpu_custom_call.1} parent=0 // pred_check
    _
  $region67: #{tpu_custom_call.1} parent=0 // pred_check_branch
    %60 = sbr.rel (0) target = $region69
  $region68: #{tpu_custom_call.1} parent=0 // pred_region
    _
  $region69: #{tpu_custom_call.1} parent=0 // pred_fallthru
    _
  // Predicated region
  $region70: #{tpu_custom_call.1} parent=0 // pred_check
    _
  $region71: #{tpu_custom_call.1} parent=0 // pred_check_branch
    %62 = sbr.rel (0) target = $region73
  $region72: #{tpu_custom_call.1} parent=0 // pred_region
    _
  $region73: #{tpu_custom_call.1} parent=0 // pred_fallthru
    _
  // Predicated region
  $region74: #{tpu_custom_call.1} parent=0 // pred_check
    _
  $region75: #{tpu_custom_call.1} parent=0 // pred_check_branch
    %64 = sbr.rel (0) target = $region77
  $region76: #{tpu_custom_call.1} parent=0 // pred_region
    _
  $region77: #{tpu_custom_call.1} parent=0 // pred_fallthru
    _
  // Predicated region
  $region78: #{tpu_custom_call.1} parent=0 // pred_check
    _
  $region79: #{tpu_custom_call.1} parent=0 // pred_check_branch
    %66 = sbr.rel (0) target = $region81
  $region80: #{tpu_custom_call.1} parent=0 // pred_region
    _
  $region81: #{tpu_custom_call.1} parent=0 // pred_fallthru
    _
  %v68 = vld [vmem:[%s0] sm:$0xff]
  %v69 = vld [vmem:[%s0 + $0x8] sm:$0xff]
  %v70 = vld [vmem:[%s4] sm:$0xff]
  %v71 = vld [vmem:[%s4 + $0x8] sm:$0x1]
  %v72 = vld [vmem:[%s5] sm:$0x1]
  %v74 = vlaneseq
  %v75 = vshrl.u32 %v74, 7
  %v76 = vsub.s32 0, %v75
  %v77 = vrot.slane %v72, %v76
  %vm79 = vcmask 72704
  %v81 = vsel %vm79, %v68, 0
  %v84 = vsel %vm79, %v69, 0
  %vm86 = vcmask 1040384
  %v88 = vsel %vm86, %v71, 0
  %90 = vmatprep.subr.mxu0 0.0
  %91 = vmatpush1.msra.mxu0 %v70
  %92 = vmatprep.subr.mxu0 0.0
  %93 = vmatpush1.msra.mxu0 %v88
  %94 = vmatprep.subr.mxu0 0.0
  %95 = vmatpush1.msra.mxu0 0.0
  %96 = vmatprep.subr.mxu0 0.0
  %97 = vmatpush1.msra.mxu0 0.0
  %98 = vmatprep.subr.mxu0 0.0
  %99 = vmatpush1.msra.mxu0 0.0
  %100 = vmatprep.subr.mxu0 0.0
  %101 = vmatpush1.msra.mxu0 0.0
  %102 = vmatprep.subr.mxu0 0.0
  %103 = vmatpush1.msra.mxu0 0.0
  %104 = vmatprep.subr.mxu0 0.0
  %105 = vmatpush1.msra.mxu0 0.0
  %106 = vmatprep.subr.mxu0 0.0
  %107 = vmatpush1.msra.mxu0 0.0
  %108 = vmatprep.subr.mxu0 0.0
  %109 = vmatpush1.msra.mxu0 0.0
  %110 = vmatprep.subr.mxu0 0.0
  %111 = vmatpush1.msra.mxu0 0.0
  %112 = vmatprep.subr.mxu0 0.0
  %113 = vmatpush1.msra.mxu0 0.0
  %114 = vmatprep.subr.mxu0 0.0
  %115 = vmatpush1.msra.mxu0 0.0
  %116 = vmatprep.subr.mxu0 0.0
  %117 = vmatpush1.msra.mxu0 0.0
  %118 = vmatprep.subr.mxu0 0.0
  %119 = vmatpush1.msra.mxu0 0.0
  %120 = vmatprep.subr.mxu0 0.0
  %121 = vmatpush1.msra.mxu0 0.0
  %122 = vmatprep.subr.mxu0 0.0
  %123 = vmatpush1.msra.mxu0 0.0
  %124 = vmatprep.subr.mxu0 0.0
  %125 = vmatpush1.msra.mxu0 0.0
  %126 = vmatprep.subr.mxu0 0.0
  %127 = vmatpush1.msra.mxu0 0.0
  %128 = vmatprep.subr.mxu0 0.0
  %129 = vmatpush1.msra.mxu0 0.0
  %130 = vmatprep.subr.mxu0 0.0
  %131 = vmatpush1.msra.mxu0 0.0
  %132 = vmatprep.subr.mxu0 0.0
  %133 = vmatpush1.msra.mxu0 0.0
  %134 = vmatprep.subr.mxu0 0.0
  %135 = vmatpush1.msra.mxu0 0.0
  %136 = vmatprep.subr.mxu0 0.0
  %137 = vmatpush1.msra.mxu0 0.0
  %138 = vmatprep.subr.mxu0 0.0
  %139 = vmatpush1.msra.mxu0 0.0
  %140 = vmatprep.subr.mxu0 0.0
  %141 = vmatpush1.msra.mxu0 0.0
  %142 = vmatprep.subr.mxu0 0.0
  %143 = vmatpush1.msra.mxu0 0.0
  %144 = vmatprep.subr.mxu0 0.0
  %145 = vmatpush1.msra.mxu0 0.0
  %146 = vmatprep.subr.mxu0 0.0
  %147 = vmatpush1.msra.mxu0 0.0
  %148 = vmatprep.subr.mxu0 0.0
  %149 = vmatpush1.msra.mxu0 0.0
  %150 = vmatprep.subr.mxu0 0.0
  %151 = vmatpush1.msra.mxu0 0.0
  %152 = vmatprep.subr.mxu0 0.0
  %153 = vmatpush1.msra.mxu0 0.0
  %154 = vmatprep.mubr.f32.mxu0 0.0
  %155 = vmatmul.mubr.f32.gmra.mrb[0].mxu0 %v81
  %v156 = vpop.f32.mrb[0].mxu0
  %v157 = vadd.f32 %v77, %v156
  %v158 = vpop.f32.mrb[0].mxu0
  %159 = vmatprep.mubr.f32.mxu0 0.0
  %160 = vmatmul.mubr.f32.gmra.mrb[0].mxu0 %v84
  %v161 = vpop.f32.mrb[0].mxu0
  %v162 = vadd.f32 %v77, %v161
  %v163 = vpop.f32.mrb[0].mxu0
  %164 = vdwg.mxu0
  %v165 = vld [vmem:[%s1] sm:$0xff]
  %v166 = vld [vmem:[%s1 + $0x8] sm:$0xff]
  %v167 = vadd.f32 %v157, %v165
  %v168 = vadd.f32 %v162, %v166
  %v169 = vld [vmem:[%s6] sm:$0xff]
  %v170 = vld [vmem:[%s6 + $0x8] sm:$0xff]
  %v171 = vld [vmem:[%s6 + $0x10] sm:$0xff]
  %v172 = vld [vmem:[%s6 + $0x18] sm:$0xff]
  %v173 = vld [vmem:[%s6 + $0x20] sm:$0xff]
  %v174 = vld [vmem:[%s6 + $0x28] sm:$0xff]
  %v175 = vld [vmem:[%s6 + $0x30] sm:$0xff]
  %v176 = vld [vmem:[%s6 + $0x38] sm:$0xff]
  %v177 = vld [vmem:[%s6 + $0x40] sm:$0xff]
  %v178 = vld [vmem:[%s6 + $0x48] sm:$0xff]
  %v179 = vld [vmem:[%s6 + $0x50] sm:$0xff]
  %v180 = vld [vmem:[%s6 + $0x58] sm:$0xff]
  %v181 = vld [vmem:[%s6 + $0x60] sm:$0xff]
  %v182 = vld [vmem:[%s6 + $0x68] sm:$0xff]
  %v183 = vld [vmem:[%s6 + $0x70] sm:$0xff]
  %v184 = vld [vmem:[%s6 + $0x78] sm:$0xff]
  %v185 = vld [vmem:[%s7] sm:$0x3]
  %v187 = vlaneseq
  %v188 = vshrl.u32 %v187, 7
  %v189 = vsub.s32 0, %v188
  %v190 = vrot.slane %v185, %v189
  %v191 = vlaneseq
  %v192 = vshrl.u32 %v191, 7
  %v193 = vsub.s32 1, %v192
  %v194 = vrot.slane %v185, %v193
  %vm197 = vcmask 523264
  %v199 = vsel %vm197, %v167, 0
  %v202 = vsel %vm197, %v168, 0
  %204 = vmatprep.subr.mxu0 %v170
  %205 = vmatpush1.msra.mxu0 %v169
  %206 = vmatprep.subr.mxu0 %v172
  %207 = vmatpush1.msra.mxu0 %v171
  %208 = vmatprep.subr.mxu0 %v174
  %209 = vmatpush1.msra.mxu0 %v173
  %210 = vmatprep.subr.mxu0 %v176
  %211 = vmatpush1.msra.mxu0 %v175
  %212 = vmatprep.subr.mxu0 %v178
  %213 = vmatpush1.msra.mxu0 %v177
  %214 = vmatprep.subr.mxu0 %v180
  %215 = vmatpush1.msra.mxu0 %v179
  %216 = vmatprep.subr.mxu0 %v182
  %217 = vmatpush1.msra.mxu0 %v181
  %218 = vmatprep.subr.mxu0 %v184
  %219 = vmatpush1.msra.mxu0 %v183
  %220 = vmatprep.subr.mxu0 0.0
  %221 = vmatpush1.msra.mxu0 0.0
  %222 = vmatprep.subr.mxu0 0.0
  %223 = vmatpush1.msra.mxu0 0.0
  %224 = vmatprep.subr.mxu0 0.0
  %225 = vmatpush1.msra.mxu0 0.0
  %226 = vmatprep.subr.mxu0 0.0
  %227 = vmatpush1.msra.mxu0 0.0
  %228 = vmatprep.subr.mxu0 0.0
  %229 = vmatpush1.msra.mxu0 0.0
  %230 = vmatprep.subr.mxu0 0.0
  %231 = vmatpush1.msra.mxu0 0.0
  %232 = vmatprep.subr.mxu0 0.0
  %233 = vmatpush1.msra.mxu0 0.0
  %234 = vmatprep.subr.mxu0 0.0
  %235 = vmatpush1.msra.mxu0 0.0
  %236 = vmatprep.subr.mxu0 0.0
  %237 = vmatpush1.msra.mxu0 0.0
  %238 = vmatprep.subr.mxu0 0.0
  %239 = vmatpush1.msra.mxu0 0.0
  %240 = vmatprep.subr.mxu0 0.0
  %241 = vmatpush1.msra.mxu0 0.0
  %242 = vmatprep.subr.mxu0 0.0
  %243 = vmatpush1.msra.mxu0 0.0
  %244 = vmatprep.subr.mxu0 0.0
  %245 = vmatpush1.msra.mxu0 0.0
  %246 = vmatprep.subr.mxu0 0.0
  %247 = vmatpush1.msra.mxu0 0.0
  %248 = vmatprep.subr.mxu0 0.0
  %249 = vmatpush1.msra.mxu0 0.0
  %250 = vmatprep.subr.mxu0 0.0
  %251 = vmatpush1.msra.mxu0 0.0
  %252 = vmatprep.subr.mxu0 0.0
  %253 = vmatpush1.msra.mxu0 0.0
  %254 = vmatprep.subr.mxu0 0.0
  %255 = vmatpush1.msra.mxu0 0.0
  %256 = vmatprep.subr.mxu0 0.0
  %257 = vmatpush1.msra.mxu0 0.0
  %258 = vmatprep.subr.mxu0 0.0
  %259 = vmatpush1.msra.mxu0 0.0
  %260 = vmatprep.subr.mxu0 0.0
  %261 = vmatpush1.msra.mxu0 0.0
  %262 = vmatprep.subr.mxu0 0.0
  %263 = vmatpush1.msra.mxu0 0.0
  %264 = vmatprep.subr.mxu0 0.0
  %265 = vmatpush1.msra.mxu0 0.0
  %266 = vmatprep.subr.mxu0 0.0
  %267 = vmatpush1.msra.mxu0 0.0
  %268 = vmatprep.mubr.f32.mxu0 0.0
  %269 = vmatmul.mubr.f32.gmra.mrb[0].mxu0 %v199
  %v270 = vpop.f32.mrb[0].mxu0
  %v271 = vadd.f32 %v190, %v270
  %v272 = vpop.f32.mrb[0].mxu0
  %v273 = vadd.f32 %v194, %v272
  %274 = vmatprep.mubr.f32.mxu0 0.0
  %275 = vmatmul.mubr.f32.gmra.mrb[0].mxu0 %v202
  %v276 = vpop.f32.mrb[0].mxu0
  %v277 = vadd.f32 %v190, %v276
  %v278 = vpop.f32.mrb[0].mxu0
  %v279 = vadd.f32 %v194, %v278
  %280 = vdwg.mxu0
  %v281 = vld [vmem:[%s2] sm:$0xff]
  %v282 = vld [vmem:[%s2 + $0x8] sm:$0xff]
  %v283 = vld [vmem:[%s2 + $0x10] sm:$0xff]
  %v284 = vld [vmem:[%s2 + $0x18] sm:$0xff]
  %v285 = vld [vmem:[%s2 + $0x20] sm:$0xff]
  %v286 = vld [vmem:[%s2 + $0x28] sm:$0xff]
  %v287 = vld [vmem:[%s2 + $0x30] sm:$0xff]
  %v288 = vld [vmem:[%s2 + $0x38] sm:$0xff]
  %v289 = vld [vmem:[%s3] sm:$0xf]
  %291 = vrot.lane.b32.xlu0 %v271, 64
  %v292 = vpop.permute.xlu0 %291
  %v294 = vmul.f32 %v271, %v292
  %296 = vrot.lane.b32.xlu0 %v277, 64
  %v297 = vpop.permute.xlu0 %296
  %v299 = vmul.f32 %v271, %v297
  %v300 = vmul.f32 %v277, %v292
  %v301 = vmul.f32 %v277, %v297
  %v303 = vsel %vm197, %v294, 0
  %v306 = vsel %vm197, %v299, 0
  %v309 = vsel %vm197, %v300, 0
  %v312 = vsel %vm197, %v301, 0
  %314 = vmatprep.subr.mxu0 0.0
  %315 = vmatpush1.msra.mxu0 %v281
  %316 = vmatprep.subr.mxu0 0.0
  %317 = vmatpush1.msra.mxu0 %v282
  %318 = vmatprep.subr.mxu0 0.0
  %319 = vmatpush1.msra.mxu0 %v283
  %320 = vmatprep.subr.mxu0 0.0
  %321 = vmatpush1.msra.mxu0 %v284
  %322 = vmatprep.subr.mxu0 0.0
  %323 = vmatpush1.msra.mxu0 %v285
  %324 = vmatprep.subr.mxu0 0.0
  %325 = vmatpush1.msra.mxu0 %v286
  %326 = vmatprep.subr.mxu0 0.0
  %327 = vmatpush1.msra.mxu0 %v287
  %328 = vmatprep.subr.mxu0 0.0
  %329 = vmatpush1.msra.mxu0 %v288
  %330 = vmatprep.subr.mxu0 0.0
  %331 = vmatpush1.msra.mxu0 0.0
  %332 = vmatprep.subr.mxu0 0.0
  %333 = vmatpush1.msra.mxu0 0.0
  %334 = vmatprep.subr.mxu0 0.0
  %335 = vmatpush1.msra.mxu0 0.0
  %336 = vmatprep.subr.mxu0 0.0
  %337 = vmatpush1.msra.mxu0 0.0
  %338 = vmatprep.subr.mxu0 0.0
  %339 = vmatpush1.msra.mxu0 0.0
  %340 = vmatprep.subr.mxu0 0.0
  %341 = vmatpush1.msra.mxu0 0.0
  %342 = vmatprep.subr.mxu0 0.0
  %343 = vmatpush1.msra.mxu0 0.0
  %344 = vmatprep.subr.mxu0 0.0
  %345 = vmatpush1.msra.mxu0 0.0
  %346 = vmatprep.subr.mxu0 0.0
  %347 = vmatpush1.msra.mxu0 0.0
  %348 = vmatprep.subr.mxu0 0.0
  %349 = vmatpush1.msra.mxu0 0.0
  %350 = vmatprep.subr.mxu0 0.0
  %351 = vmatpush1.msra.mxu0 0.0
  %352 = vmatprep.subr.mxu0 0.0
  %353 = vmatpush1.msra.mxu0 0.0
  %354 = vmatprep.subr.mxu0 0.0
  %355 = vmatpush1.msra.mxu0 0.0
  %356 = vmatprep.subr.mxu0 0.0
  %357 = vmatpush1.msra.mxu0 0.0
  %358 = vmatprep.subr.mxu0 0.0
  %359 = vmatpush1.msra.mxu0 0.0
  %360 = vmatprep.subr.mxu0 0.0
  %361 = vmatpush1.msra.mxu0 0.0
  %362 = vmatprep.subr.mxu0 0.0
  %363 = vmatpush1.msra.mxu0 0.0
  %364 = vmatprep.subr.mxu0 0.0
  %365 = vmatpush1.msra.mxu0 0.0
  %366 = vmatprep.subr.mxu0 0.0
  %367 = vmatpush1.msra.mxu0 0.0
  %368 = vmatprep.subr.mxu0 0.0
  %369 = vmatpush1.msra.mxu0 0.0
  %370 = vmatprep.subr.mxu0 0.0
  %371 = vmatpush1.msra.mxu0 0.0
  %372 = vmatprep.subr.mxu0 0.0
  %373 = vmatpush1.msra.mxu0 0.0
  %374 = vmatprep.subr.mxu0 0.0
  %375 = vmatpush1.msra.mxu0 0.0
  %376 = vmatprep.subr.mxu0 0.0
  %377 = vmatpush1.msra.mxu0 0.0
  %378 = vmatprep.mubr.f32.mxu0 0.0
  %379 = vmatmul.mubr.f32.gmra.mrb[0].mxu0 %v303
  %v380 = vpop.f32.mrb[0].mxu0
  %v381 = vadd.f32 0.0, %v380
  %v382 = vpop.f32.mrb[0].mxu0
  %383 = vmatprep.mubr.f32.mxu0 0.0
  %384 = vmatmul.mubr.f32.gmra.mrb[0].mxu0 %v306
  %v385 = vpop.f32.mrb[0].mxu0
  %v386 = vadd.f32 0.0, %v385
  %v387 = vpop.f32.mrb[0].mxu0
  %388 = vmatprep.mubr.f32.mxu0 0.0
  %389 = vmatmul.mubr.f32.gmra.mrb[0].mxu0 %v309
  %v390 = vpop.f32.mrb[0].mxu0
  %v391 = vadd.f32 0.0, %v390
  %v392 = vpop.f32.mrb[0].mxu0
  %393 = vmatprep.mubr.f32.mxu0 0.0
  %394 = vmatmul.mubr.f32.gmra.mrb[0].mxu0 %v312
  %v395 = vpop.f32.mrb[0].mxu0
  %v396 = vadd.f32 0.0, %v395
  %v397 = vpop.f32.mrb[0].mxu0
  %398 = vdwg.mxu0
  %v399 = vmul.f32 %v381, 0.25
  %v400 = vmul.f32 %v386, 0.25
  %v401 = vmul.f32 %v391, 0.25
  %v402 = vmul.f32 %v396, 0.25
  %v403 = vsub.f32 %v400, %v399
  %v404 = vand.u32 2147483647, %v403
  %v405 = vsub.f32 0.0, %v404
  %v406 = vmul.f32 %v405, 1.442695
  %v407 = vpow.pop %v406
  %vm408 = vcmp.ge.f32.partialorder %v403, 0.0
  %v409 = vadd.f32 %v407, 1.0
  %v410 = vrcp.pop %v409
  %v411 = vmul.f32 1.0, %v410
  %v412 = vmul.f32 %v407, %v410
  %v413 = vsel %vm408, %v411, %v412
  %v414 = vsub.f32 1.0, %v413
  %v415 = vsub.f32 %v402, %v401
  %v416 = vand.u32 2147483647, %v415
  %v417 = vsub.f32 0.0, %v416
  %v418 = vmul.f32 %v417, 1.442695
  %v419 = vpow.pop %v418
  %vm420 = vcmp.ge.f32.partialorder %v415, 0.0
  %v421 = vadd.f32 %v419, 1.0
  %v422 = vrcp.pop %v421
  %v423 = vmul.f32 1.0, %v422
  %v424 = vmul.f32 %v419, %v422
  %v425 = vsel %vm420, %v423, %v424
  %v426 = vsub.f32 1.0, %v425
  %vm427 = vcmask 31744
  %v429 = vsel %vm427, %v414, 0
  %v432 = vsel %vm427, %v413, 0
  %v435 = vsel %vm427, %v426, 0
  %v438 = vsel %vm427, %v425, 0
  %vm440 = vcmask 1043456
  %v442 = vsel %vm440, %v289, 0
  %444 = vmatprep.subr.mxu0 0.0
  %445 = vmatpush1.msra.mxu0 %v442
  %446 = vmatprep.subr.mxu0 0.0
  %447 = vmatpush1.msra.mxu0 0.0
  %448 = vmatprep.subr.mxu0 0.0
  %449 = vmatpush1.msra.mxu0 0.0
  %450 = vmatprep.subr.mxu0 0.0
  %451 = vmatpush1.msra.mxu0 0.0
  %452 = vmatprep.subr.mxu0 0.0
  %453 = vmatpush1.msra.mxu0 0.0
  %454 = vmatprep.subr.mxu0 0.0
  %455 = vmatpush1.msra.mxu0 0.0
  %456 = vmatprep.subr.mxu0 0.0
  %457 = vmatpush1.msra.mxu0 0.0
  %458 = vmatprep.subr.mxu0 0.0
  %459 = vmatpush1.msra.mxu0 0.0
  %460 = vmatprep.subr.mxu0 0.0
  %461 = vmatpush1.msra.mxu0 0.0
  %462 = vmatprep.subr.mxu0 0.0
  %463 = vmatpush1.msra.mxu0 0.0
  %464 = vmatprep.subr.mxu0 0.0
  %465 = vmatpush1.msra.mxu0 0.0
  %466 = vmatprep.subr.mxu0 0.0
  %467 = vmatpush1.msra.mxu0 0.0
  %468 = vmatprep.subr.mxu0 0.0
  %469 = vmatpush1.msra.mxu0 0.0
  %470 = vmatprep.subr.mxu0 0.0
  %471 = vmatpush1.msra.mxu0 0.0
  %472 = vmatprep.subr.mxu0 0.0
  %473 = vmatpush1.msra.mxu0 0.0
  %474 = vmatprep.subr.mxu0 0.0
  %475 = vmatpush1.msra.mxu0 0.0
  %476 = vmatprep.subr.mxu0 0.0
  %477 = vmatpush1.msra.mxu0 0.0
  %478 = vmatprep.subr.mxu0 0.0
  %479 = vmatpush1.msra.mxu0 0.0
  %480 = vmatprep.subr.mxu0 0.0
  %481 = vmatpush1.msra.mxu0 0.0
  %482 = vmatprep.subr.mxu0 0.0
  %483 = vmatpush1.msra.mxu0 0.0
  %484 = vmatprep.subr.mxu0 0.0
  %485 = vmatpush1.msra.mxu0 0.0
  %486 = vmatprep.subr.mxu0 0.0
  %487 = vmatpush1.msra.mxu0 0.0
  %488 = vmatprep.subr.mxu0 0.0
  %489 = vmatpush1.msra.mxu0 0.0
  %490 = vmatprep.subr.mxu0 0.0
  %491 = vmatpush1.msra.mxu0 0.0
  %492 = vmatprep.subr.mxu0 0.0
  %493 = vmatpush1.msra.mxu0 0.0
  %494 = vmatprep.subr.mxu0 0.0
  %495 = vmatpush1.msra.mxu0 0.0
  %496 = vmatprep.subr.mxu0 0.0
  %497 = vmatpush1.msra.mxu0 0.0
  %498 = vmatprep.subr.mxu0 0.0
  %499 = vmatpush1.msra.mxu0 0.0
  %500 = vmatprep.subr.mxu0 0.0
  %501 = vmatpush1.msra.mxu0 0.0
  %502 = vmatprep.subr.mxu0 0.0
  %503 = vmatpush1.msra.mxu0 0.0
  %504 = vmatprep.subr.mxu0 0.0
  %505 = vmatpush1.msra.mxu0 0.0
  %506 = vmatprep.subr.mxu0 0.0
  %507 = vmatpush1.msra.mxu0 0.0
  %508 = vmatprep.mubr.f32.mxu0 0.0
  %509 = vmatmul.mubr.f32.gmra.mrb[0].mxu0 %v429
  %v510 = vpop.f32.mrb[0].mxu0
  %v511 = vadd.f32 0.0, %v510
  %v512 = vpop.f32.mrb[0].mxu0
  %513 = vmatprep.mubr.f32.mxu0 0.0
  %514 = vmatmul.mubr.f32.gmra.mrb[0].mxu0 %v432
  %v515 = vpop.f32.mrb[0].mxu0
  %v516 = vadd.f32 0.0, %v515
  %v517 = vpop.f32.mrb[0].mxu0
  %518 = vmatprep.mubr.f32.mxu0 0.0
  %519 = vmatmul.mubr.f32.gmra.mrb[0].mxu0 %v435
  %v520 = vpop.f32.mrb[0].mxu0
  %v521 = vadd.f32 0.0, %v520
  %v522 = vpop.f32.mrb[0].mxu0
  %523 = vmatprep.mubr.f32.mxu0 0.0
  %524 = vmatmul.mubr.f32.gmra.mrb[0].mxu0 %v438
  %v525 = vpop.f32.mrb[0].mxu0
  %v526 = vadd.f32 0.0, %v525
  %v527 = vpop.f32.mrb[0].mxu0
  %528 = vdwg.mxu0
  %v529 = vmul.f32 %v511, %v273
  %v530 = vmul.f32 %v516, %v279
  %v531 = vadd.f32 %v529, %v530
  %v532 = vmul.f32 %v521, %v273
  %v533 = vmul.f32 %v526, %v279
  %v534 = vadd.f32 %v532, %v533
  %v535 = vld [vmem:[%s8] sm:$0xff]
  %v536 = vld [vmem:[%s8 + $0x8] sm:$0xff]
  %v537 = vld [vmem:[%s8 + $0x10] sm:$0xff]
  %v538 = vld [vmem:[%s8 + $0x18] sm:$0xff]
  %v539 = vld [vmem:[%s8 + $0x20] sm:$0xff]
  %v540 = vld [vmem:[%s8 + $0x28] sm:$0xff]
  %v541 = vld [vmem:[%s8 + $0x30] sm:$0xff]
  %v542 = vld [vmem:[%s8 + $0x38] sm:$0xff]
  %v543 = vld [vmem:[%s9] sm:$0x1]
  %v545 = vlaneseq
  %v546 = vshrl.u32 %v545, 7
  %v547 = vsub.s32 0, %v546
  %v548 = vrot.slane %v543, %v547
  %v551 = vsel %vm197, %v531, 0
  %v554 = vsel %vm197, %v534, 0
  %556 = vmatprep.subr.mxu0 0.0
  %557 = vmatpush1.msra.mxu0 %v535
  %558 = vmatprep.subr.mxu0 0.0
  %559 = vmatpush1.msra.mxu0 %v536
  %560 = vmatprep.subr.mxu0 0.0
  %561 = vmatpush1.msra.mxu0 %v537
  %562 = vmatprep.subr.mxu0 0.0
  %563 = vmatpush1.msra.mxu0 %v538
  %564 = vmatprep.subr.mxu0 0.0
  %565 = vmatpush1.msra.mxu0 %v539
  %566 = vmatprep.subr.mxu0 0.0
  %567 = vmatpush1.msra.mxu0 %v540
  %568 = vmatprep.subr.mxu0 0.0
  %569 = vmatpush1.msra.mxu0 %v541
  %570 = vmatprep.subr.mxu0 0.0
  %571 = vmatpush1.msra.mxu0 %v542
  %572 = vmatprep.subr.mxu0 0.0
  %573 = vmatpush1.msra.mxu0 0.0
  %574 = vmatprep.subr.mxu0 0.0
  %575 = vmatpush1.msra.mxu0 0.0
  %576 = vmatprep.subr.mxu0 0.0
  %577 = vmatpush1.msra.mxu0 0.0
  %578 = vmatprep.subr.mxu0 0.0
  %579 = vmatpush1.msra.mxu0 0.0
  %580 = vmatprep.subr.mxu0 0.0
  %581 = vmatpush1.msra.mxu0 0.0
  %582 = vmatprep.subr.mxu0 0.0
  %583 = vmatpush1.msra.mxu0 0.0
  %584 = vmatprep.subr.mxu0 0.0
  %585 = vmatpush1.msra.mxu0 0.0
  %586 = vmatprep.subr.mxu0 0.0
  %587 = vmatpush1.msra.mxu0 0.0
  %588 = vmatprep.subr.mxu0 0.0
  %589 = vmatpush1.msra.mxu0 0.0
  %590 = vmatprep.subr.mxu0 0.0
  %591 = vmatpush1.msra.mxu0 0.0
  %592 = vmatprep.subr.mxu0 0.0
  %593 = vmatpush1.msra.mxu0 0.0
  %594 = vmatprep.subr.mxu0 0.0
  %595 = vmatpush1.msra.mxu0 0.0
  %596 = vmatprep.subr.mxu0 0.0
  %597 = vmatpush1.msra.mxu0 0.0
  %598 = vmatprep.subr.mxu0 0.0
  %599 = vmatpush1.msra.mxu0 0.0
  %600 = vmatprep.subr.mxu0 0.0
  %601 = vmatpush1.msra.mxu0 0.0
  %602 = vmatprep.subr.mxu0 0.0
  %603 = vmatpush1.msra.mxu0 0.0
  %604 = vmatprep.subr.mxu0 0.0
  %605 = vmatpush1.msra.mxu0 0.0
  %606 = vmatprep.subr.mxu0 0.0
  %607 = vmatpush1.msra.mxu0 0.0
  %608 = vmatprep.subr.mxu0 0.0
  %609 = vmatpush1.msra.mxu0 0.0
  %610 = vmatprep.subr.mxu0 0.0
  %611 = vmatpush1.msra.mxu0 0.0
  %612 = vmatprep.subr.mxu0 0.0
  %613 = vmatpush1.msra.mxu0 0.0
  %614 = vmatprep.subr.mxu0 0.0
  %615 = vmatpush1.msra.mxu0 0.0
  %616 = vmatprep.subr.mxu0 0.0
  %617 = vmatpush1.msra.mxu0 0.0
  %618 = vmatprep.subr.mxu0 0.0
  %619 = vmatpush1.msra.mxu0 0.0
  %620 = vmatprep.mubr.f32.mxu0 0.0
  %621 = vmatmul.mubr.f32.gmra.mrb[0].mxu0 %v551
  %v622 = vpop.f32.mrb[0].mxu0
  %v623 = vadd.f32 %v548, %v622
  %v624 = vpop.f32.mrb[0].mxu0
  %625 = vmatprep.mubr.f32.mxu0 0.0
  %626 = vmatmul.mubr.f32.gmra.mrb[0].mxu0 %v554
  %v627 = vpop.f32.mrb[0].mxu0
  %v628 = vadd.f32 %v548, %v627
  %v629 = vpop.f32.mrb[0].mxu0
  %630 = vdwg.mxu0
  %v631 = vadd.f32 %v167, %v623
  %v632 = vadd.f32 %v168, %v628
  %v633 = vld [vmem:[%s10] sm:$0x1]
  %v634 = vld [vmem:[%s11] sm:$0x1]
  %v635 = vsel %vm197, %v631, 0.0
  %636 = vadd.xlane.f32.xlu0 %v635
  %v637 = vpop.xlane.xlu0 %636
  %v638 = vsel %vm197, %v632, 0.0
  %639 = vadd.xlane.f32.xlu0 %v638
  %v640 = vpop.xlane.xlu0 %639
  %v641 = vrcp.pop 64.0
  %v642 = vmul.f32 %v637, %v641
  %v643 = vmul.f32 %v640, %v641
  %v644 = vsub.f32 %v631, %v642
  %v645 = vsub.f32 %v632, %v643
  %v646 = vmul.f32 %v644, %v644
  %v647 = vmul.f32 %v645, %v645
  %v648 = vsel %vm197, %v646, 0.0
  %649 = vadd.xlane.f32.xlu0 %v648
  %v650 = vpop.xlane.xlu0 %649
  %v651 = vsel %vm197, %v647, 0.0
  %652 = vadd.xlane.f32.xlu0 %v651
  %v653 = vpop.xlane.xlu0 %652
  %v654 = vmul.f32 %v650, %v641
  %v655 = vmul.f32 %v653, %v641
  %v656 = vadd.f32 %v654, 1e-05
  %v657 = vadd.f32 %v655, 1e-05
  %v658 = vrsqrt.pop %v656
  %v659 = vrsqrt.pop %v657
  %v660 = vmul.f32 %v644, %v658
  %v661 = vmul.f32 %v645, %v659
  %v663 = vlaneseq
  %v664 = vshrl.u32 %v663, 7
  %v665 = vsub.s32 0, %v664
  %v666 = vrot.slane %v633, %v665
  %v668 = vmul.f32 %v660, %v666
  %v669 = vmul.f32 %v661, %v666
  %v671 = vlaneseq
  %v672 = vshrl.u32 %v671, 7
  %v673 = vsub.s32 0, %v672
  %v674 = vrot.slane %v634, %v673
  %v676 = vadd.f32 %v668, %v674
  %v677 = vadd.f32 %v669, %v674
  %v678 = vpack.c.bf16 %v677, %v676
  %v679 = vld [vmem:[%s12] sm:$0xff]
  %v680 = vld [vmem:[%s12 + $0x8] sm:$0xff]
  %v681 = vld [vmem:[%s12 + $0x10] sm:$0xff]
  %v682 = vld [vmem:[%s12 + $0x18] sm:$0xff]
  %v683 = vld [vmem:[%s12 + $0x20] sm:$0xff]
  %v684 = vld [vmem:[%s12 + $0x28] sm:$0xff]
  %v685 = vld [vmem:[%s12 + $0x30] sm:$0xff]
  %v686 = vld [vmem:[%s12 + $0x38] sm:$0xff]
  %v687 = vld [vmem:[%s12 + $0x40] sm:$0xff]
  %v688 = vld [vmem:[%s12 + $0x48] sm:$0xff]
  %v689 = vld [vmem:[%s12 + $0x50] sm:$0xff]
  %v690 = vld [vmem:[%s12 + $0x58] sm:$0xff]
  %v691 = vld [vmem:[%s12 + $0x60] sm:$0xff]
  %v692 = vld [vmem:[%s12 + $0x68] sm:$0xff]
  %v693 = vld [vmem:[%s12 + $0x70] sm:$0xff]
  %v694 = vld [vmem:[%s12 + $0x78] sm:$0xff]
  %v695 = vld [vmem:[%s12 + $0x80] sm:$0xff]
  %v696 = vld [vmem:[%s12 + $0x88] sm:$0xff]
  %v697 = vld [vmem:[%s12 + $0x90] sm:$0xff]
  %v698 = vld [vmem:[%s12 + $0x98] sm:$0xff]
  %v699 = vld [vmem:[%s12 + $0xa0] sm:$0xff]
  %v700 = vld [vmem:[%s12 + $0xa8] sm:$0xff]
  %v701 = vld [vmem:[%s12 + $0xb0] sm:$0xff]
  %v702 = vld [vmem:[%s12 + $0xb8] sm:$0xff]
  %v703 = vld [vmem:[%s12 + $0xc0] sm:$0xff]
  %v704 = vld [vmem:[%s12 + $0xc8] sm:$0xff]
  %v705 = vld [vmem:[%s12 + $0xd0] sm:$0xff]
  %v706 = vld [vmem:[%s12 + $0xd8] sm:$0xff]
  %v707 = vld [vmem:[%s12 + $0xe0] sm:$0xff]
  %v708 = vld [vmem:[%s12 + $0xe8] sm:$0xff]
  %v709 = vld [vmem:[%s12 + $0xf0] sm:$0xff]
  %v710 = vld [vmem:[%s12 + $0xf8] sm:$0xff]
  %v711 = vld [vmem:[%s12 + $0x100] sm:$0xff]
  %v712 = vld [vmem:[%s12 + $0x108] sm:$0xff]
  %v713 = vld [vmem:[%s12 + $0x110] sm:$0xff]
  %v714 = vld [vmem:[%s12 + $0x118] sm:$0xff]
  %v715 = vld [vmem:[%s12 + $0x120] sm:$0xff]
  %v716 = vld [vmem:[%s12 + $0x128] sm:$0xff]
  %v717 = vld [vmem:[%s12 + $0x130] sm:$0xff]
  %v718 = vld [vmem:[%s12 + $0x138] sm:$0xff]
  %v719 = vld [vmem:[%s12 + $0x140] sm:$0xff]
  %v720 = vld [vmem:[%s12 + $0x148] sm:$0xff]
  %v721 = vld [vmem:[%s12 + $0x150] sm:$0xff]
  %v722 = vld [vmem:[%s12 + $0x158] sm:$0xff]
  %v723 = vld [vmem:[%s12 + $0x160] sm:$0xff]
  %v724 = vld [vmem:[%s12 + $0x168] sm:$0xff]
  %v725 = vld [vmem:[%s12 + $0x170] sm:$0xff]
  %v726 = vld [vmem:[%s12 + $0x178] sm:$0xff]
  %v727 = vld [vmem:[%s12 + $0x180] sm:$0xff]
  %v728 = vld [vmem:[%s12 + $0x188] sm:$0xff]
  %v729 = vld [vmem:[%s12 + $0x190] sm:$0xff]
  %v730 = vld [vmem:[%s12 + $0x198] sm:$0xff]
  %v731 = vld [vmem:[%s12 + $0x1a0] sm:$0xff]
  %v732 = vld [vmem:[%s12 + $0x1a8] sm:$0xff]
  %v733 = vld [vmem:[%s12 + $0x1b0] sm:$0xff]
  %v734 = vld [vmem:[%s12 + $0x1b8] sm:$0xff]
  %v735 = vld [vmem:[%s12 + $0x1c0] sm:$0xff]
  %v736 = vld [vmem:[%s12 + $0x1c8] sm:$0xff]
  %v737 = vld [vmem:[%s12 + $0x1d0] sm:$0xff]
  %v738 = vld [vmem:[%s12 + $0x1d8] sm:$0xff]
  %v739 = vld [vmem:[%s12 + $0x1e0] sm:$0xff]
  %v740 = vld [vmem:[%s12 + $0x1e8] sm:$0xff]
  %v741 = vld [vmem:[%s12 + $0x1f0] sm:$0xff]
  %v742 = vld [vmem:[%s12 + $0x1f8] sm:$0xff]
  %v743 = vld [vmem:[%s13] sm:$0xff]
  %v744 = vld [vmem:[%s13 + $0x8] sm:$0xff]
  %v747 = vlaneseq
  %v748 = vshrl.u32 %v747, 7
  %v749 = vsub.s32 0, %v748
  %v750 = vrot.slane %v743, %v749
  %v751 = vlaneseq
  %v752 = vshrl.u32 %v751, 7
  %v753 = vsub.s32 1, %v752
  %v754 = vrot.slane %v743, %v753
  %v755 = vlaneseq
  %v756 = vshrl.u32 %v755, 7
  %v757 = vsub.s32 2, %v756
  %v758 = vrot.slane %v743, %v757
  %v759 = vlaneseq
  %v760 = vshrl.u32 %v759, 7
  %v761 = vsub.s32 3, %v760
  %v762 = vrot.slane %v743, %v761
  %v763 = vlaneseq
  %v764 = vshrl.u32 %v763, 7
  %v765 = vsub.s32 4, %v764
  %v766 = vrot.slane %v743, %v765
  %v767 = vlaneseq
  %v768 = vshrl.u32 %v767, 7
  %v769 = vsub.s32 5, %v768
  %v770 = vrot.slane %v743, %v769
  %v771 = vlaneseq
  %v772 = vshrl.u32 %v771, 7
  %v773 = vsub.s32 6, %v772
  %v774 = vrot.slane %v743, %v773
  %v775 = vlaneseq
  %v776 = vshrl.u32 %v775, 7
  %v777 = vsub.s32 7, %v776
  %v778 = vrot.slane %v743, %v777
  %v779 = vlaneseq
  %v780 = vshrl.u32 %v779, 7
  %v781 = vsub.s32 0, %v780
  %v782 = vrot.slane %v744, %v781
  %v783 = vlaneseq
  %v784 = vshrl.u32 %v783, 7
  %v785 = vsub.s32 1, %v784
  %v786 = vrot.slane %v744, %v785
  %v787 = vlaneseq
  %v788 = vshrl.u32 %v787, 7
  %v789 = vsub.s32 2, %v788
  %v790 = vrot.slane %v744, %v789
  %v791 = vlaneseq
  %v792 = vshrl.u32 %v791, 7
  %v793 = vsub.s32 3, %v792
  %v794 = vrot.slane %v744, %v793
  %v795 = vlaneseq
  %v796 = vshrl.u32 %v795, 7
  %v797 = vsub.s32 4, %v796
  %v798 = vrot.slane %v744, %v797
  %v799 = vlaneseq
  %v800 = vshrl.u32 %v799, 7
  %v801 = vsub.s32 5, %v800
  %v802 = vrot.slane %v744, %v801
  %v803 = vlaneseq
  %v804 = vshrl.u32 %v803, 7
  %v805 = vsub.s32 6, %v804
  %v806 = vrot.slane %v744, %v805
  %v807 = vlaneseq
  %v808 = vshrl.u32 %v807, 7
  %v809 = vsub.s32 7, %v808
  %v810 = vrot.slane %v744, %v809
  %v891 = vunpack.c.l.b16 %v679
  %v892 = vunpack.c.h.b16 %v679
  %v893 = vunpack.c.l.b16 %v680
  %v894 = vunpack.c.h.b16 %v680
  %v895 = vunpack.c.l.b16 %v681
  %v896 = vunpack.c.h.b16 %v681
  %v897 = vunpack.c.l.b16 %v682
  %v898 = vunpack.c.h.b16 %v682
  %v899 = vunpack.c.l.b16 %v683
  %v900 = vunpack.c.h.b16 %v683
  %v901 = vunpack.c.l.b16 %v684
  %v902 = vunpack.c.h.b16 %v684
  %v903 = vunpack.c.l.b16 %v685
  %v904 = vunpack.c.h.b16 %v685
  %v905 = vunpack.c.l.b16 %v686
  %v906 = vunpack.c.h.b16 %v686
  %v907 = vunpack.c.l.b16 %v687
  %v908 = vunpack.c.h.b16 %v687
  %v909 = vunpack.c.l.b16 %v688
  %v910 = vunpack.c.h.b16 %v688
  %v911 = vunpack.c.l.b16 %v689
  %v912 = vunpack.c.h.b16 %v689
  %v913 = vunpack.c.l.b16 %v690
  %v914 = vunpack.c.h.b16 %v690
  %v915 = vunpack.c.l.b16 %v691
  %v916 = vunpack.c.h.b16 %v691
  %v917 = vunpack.c.l.b16 %v692
  %v918 = vunpack.c.h.b16 %v692
  %v919 = vunpack.c.l.b16 %v693
  %v920 = vunpack.c.h.b16 %v693
  %v921 = vunpack.c.l.b16 %v694
  %v922 = vunpack.c.h.b16 %v694
  %v923 = vunpack.c.l.b16 %v695
  %v924 = vunpack.c.h.b16 %v695
  %v925 = vunpack.c.l.b16 %v696
  %v926 = vunpack.c.h.b16 %v696
  %v927 = vunpack.c.l.b16 %v697
  %v928 = vunpack.c.h.b16 %v697
  %v929 = vunpack.c.l.b16 %v698
  %v930 = vunpack.c.h.b16 %v698
  %v931 = vunpack.c.l.b16 %v699
  %v932 = vunpack.c.h.b16 %v699
  %v933 = vunpack.c.l.b16 %v700
  %v934 = vunpack.c.h.b16 %v700
  %v935 = vunpack.c.l.b16 %v701
  %v936 = vunpack.c.h.b16 %v701
  %v937 = vunpack.c.l.b16 %v702
  %v938 = vunpack.c.h.b16 %v702
  %v939 = vunpack.c.l.b16 %v703
  %v940 = vunpack.c.h.b16 %v703
  %v941 = vunpack.c.l.b16 %v704
  %v942 = vunpack.c.h.b16 %v704
  %v943 = vunpack.c.l.b16 %v705
  %v944 = vunpack.c.h.b16 %v705
  %v945 = vunpack.c.l.b16 %v706
  %v946 = vunpack.c.h.b16 %v706
  %v947 = vunpack.c.l.b16 %v707
  %v948 = vunpack.c.h.b16 %v707
  %v949 = vunpack.c.l.b16 %v708
  %v950 = vunpack.c.h.b16 %v708
  %v951 = vunpack.c.l.b16 %v709
  %v952 = vunpack.c.h.b16 %v709
  %v953 = vunpack.c.l.b16 %v710
  %v954 = vunpack.c.h.b16 %v710
  %v955 = vunpack.c.l.b16 %v711
  %v956 = vunpack.c.h.b16 %v711
  %v957 = vunpack.c.l.b16 %v712
  %v958 = vunpack.c.h.b16 %v712
  %v959 = vunpack.c.l.b16 %v713
  %v960 = vunpack.c.h.b16 %v713
  %v961 = vunpack.c.l.b16 %v714
  %v962 = vunpack.c.h.b16 %v714
  %v963 = vunpack.c.l.b16 %v715
  %v964 = vunpack.c.h.b16 %v715
  %v965 = vunpack.c.l.b16 %v716
  %v966 = vunpack.c.h.b16 %v716
  %v967 = vunpack.c.l.b16 %v717
  %v968 = vunpack.c.h.b16 %v717
  %v969 = vunpack.c.l.b16 %v718
  %v970 = vunpack.c.h.b16 %v718
  %v971 = vunpack.c.l.b16 %v719
  %v972 = vunpack.c.h.b16 %v719
  %v973 = vunpack.c.l.b16 %v720
  %v974 = vunpack.c.h.b16 %v720
  %v975 = vunpack.c.l.b16 %v721
  %v976 = vunpack.c.h.b16 %v721
  %v977 = vunpack.c.l.b16 %v722
  %v978 = vunpack.c.h.b16 %v722
  %v979 = vunpack.c.l.b16 %v723
  %v980 = vunpack.c.h.b16 %v723
  %v981 = vunpack.c.l.b16 %v724
  %v982 = vunpack.c.h.b16 %v724
  %v983 = vunpack.c.l.b16 %v725
  %v984 = vunpack.c.h.b16 %v725
  %v985 = vunpack.c.l.b16 %v726
  %v986 = vunpack.c.h.b16 %v726
  %v987 = vunpack.c.l.b16 %v727
  %v988 = vunpack.c.h.b16 %v727
  %v989 = vunpack.c.l.b16 %v728
  %v990 = vunpack.c.h.b16 %v728
  %v991 = vunpack.c.l.b16 %v729
  %v992 = vunpack.c.h.b16 %v729
  %v993 = vunpack.c.l.b16 %v730
  %v994 = vunpack.c.h.b16 %v730
  %v995 = vunpack.c.l.b16 %v731
  %v996 = vunpack.c.h.b16 %v731
  %v997 = vunpack.c.l.b16 %v732
  %v998 = vunpack.c.h.b16 %v732
  %v999 = vunpack.c.l.b16 %v733
  %v1000 = vunpack.c.h.b16 %v733
  %v1001 = vunpack.c.l.b16 %v734
  %v1002 = vunpack.c.h.b16 %v734
  %v1003 = vunpack.c.l.b16 %v735
  %v1004 = vunpack.c.h.b16 %v735
  %v1005 = vunpack.c.l.b16 %v736
  %v1006 = vunpack.c.h.b16 %v736
  %v1007 = vunpack.c.l.b16 %v737
  %v1008 = vunpack.c.h.b16 %v737
  %v1009 = vunpack.c.l.b16 %v738
  %v1010 = vunpack.c.h.b16 %v738
  %v1011 = vunpack.c.l.b16 %v739
  %v1012 = vunpack.c.h.b16 %v739
  %v1013 = vunpack.c.l.b16 %v740
  %v1014 = vunpack.c.h.b16 %v740
  %v1015 = vunpack.c.l.b16 %v741
  %v1016 = vunpack.c.h.b16 %v741
  %v1017 = vunpack.c.l.b16 %v742
  %v1018 = vunpack.c.h.b16 %v742
  %v1019 = vpack.c.b16 %v907, %v891
  %v1020 = vpack.c.b16 %v908, %v892
  %v1021 = vpack.c.b16 %v909, %v893
  %v1022 = vpack.c.b16 %v910, %v894
  %v1023 = vpack.c.b16 %v911, %v895
  %v1024 = vpack.c.b16 %v912, %v896
  %v1025 = vpack.c.b16 %v913, %v897
  %v1026 = vpack.c.b16 %v914, %v898
  %v1027 = vpack.c.b16 %v915, %v899
  %v1028 = vpack.c.b16 %v916, %v900
  %v1029 = vpack.c.b16 %v917, %v901
  %v1030 = vpack.c.b16 %v918, %v902
  %v1031 = vpack.c.b16 %v919, %v903
  %v1032 = vpack.c.b16 %v920, %v904
  %v1033 = vpack.c.b16 %v921, %v905
  %v1034 = vpack.c.b16 %v922, %v906
  %v1035 = vpack.c.b16 %v939, %v923
  %v1036 = vpack.c.b16 %v940, %v924
  %v1037 = vpack.c.b16 %v941, %v925
  %v1038 = vpack.c.b16 %v942, %v926
  %v1039 = vpack.c.b16 %v943, %v927
  %v1040 = vpack.c.b16 %v944, %v928
  %v1041 = vpack.c.b16 %v945, %v929
  %v1042 = vpack.c.b16 %v946, %v930
  %v1043 = vpack.c.b16 %v947, %v931
  %v1044 = vpack.c.b16 %v948, %v932
  %v1045 = vpack.c.b16 %v949, %v933
  %v1046 = vpack.c.b16 %v950, %v934
  %v1047 = vpack.c.b16 %v951, %v935
  %v1048 = vpack.c.b16 %v952, %v936
  %v1049 = vpack.c.b16 %v953, %v937
  %v1050 = vpack.c.b16 %v954, %v938
  %v1051 = vpack.c.b16 %v971, %v955
  %v1052 = vpack.c.b16 %v972, %v956
  %v1053 = vpack.c.b16 %v973, %v957
  %v1054 = vpack.c.b16 %v974, %v958
  %v1055 = vpack.c.b16 %v975, %v959
  %v1056 = vpack.c.b16 %v976, %v960
  %v1057 = vpack.c.b16 %v977, %v961
  %v1058 = vpack.c.b16 %v978, %v962
  %v1059 = vpack.c.b16 %v979, %v963
  %v1060 = vpack.c.b16 %v980, %v964
  %v1061 = vpack.c.b16 %v981, %v965
  %v1062 = vpack.c.b16 %v982, %v966
  %v1063 = vpack.c.b16 %v983, %v967
  %v1064 = vpack.c.b16 %v984, %v968
  %v1065 = vpack.c.b16 %v985, %v969
  %v1066 = vpack.c.b16 %v986, %v970
  %v1067 = vpack.c.b16 %v1003, %v987
  %v1068 = vpack.c.b16 %v1004, %v988
  %v1069 = vpack.c.b16 %v1005, %v989
  %v1070 = vpack.c.b16 %v1006, %v990
  %v1071 = vpack.c.b16 %v1007, %v991
  %v1072 = vpack.c.b16 %v1008, %v992
  %v1073 = vpack.c.b16 %v1009, %v993
  %v1074 = vpack.c.b16 %v1010, %v994
  %v1075 = vpack.c.b16 %v1011, %v995
  %v1076 = vpack.c.b16 %v1012, %v996
  %v1077 = vpack.c.b16 %v1013, %v997
  %v1078 = vpack.c.b16 %v1014, %v998
  %v1079 = vpack.c.b16 %v1015, %v999
  %v1080 = vpack.c.b16 %v1016, %v1000
  %v1081 = vpack.c.b16 %v1017, %v1001
  %v1082 = vpack.c.b16 %v1018, %v1002
  %v1148 = vsel %vm197, %v678, 0
  %1150 = vmatprep.subr.bf16.mxu0 %v1020
  %1151 = vmatpush1.bf16.msra.mxu0 %v1019
  %1152 = vmatprep.subr.bf16.mxu0 %v1036
  %1153 = vmatpush1.bf16.msra.mxu0 %v1035
  %1154 = vmatprep.subr.bf16.mxu0 %v1052
  %1155 = vmatpush1.bf16.msra.mxu0 %v1051
  %1156 = vmatprep.subr.bf16.mxu0 %v1068
  %1157 = vmatpush1.bf16.msra.mxu0 %v1067
  %1158 = vmatprep.subr.bf16.mxu0 0
  %1159 = vmatpush1.bf16.msra.mxu0 0
  %1160 = vmatprep.subr.bf16.mxu0 0
  %1161 = vmatpush1.bf16.msra.mxu0 0
  %1162 = vmatprep.subr.bf16.mxu0 0
  %1163 = vmatpush1.bf16.msra.mxu0 0
  %1164 = vmatprep.subr.bf16.mxu0 0
  %1165 = vmatpush1.bf16.msra.mxu0 0
  %1166 = vmatprep.subr.bf16.mxu0 0
  %1167 = vmatpush1.bf16.msra.mxu0 0
  %1168 = vmatprep.subr.bf16.mxu0 0
  %1169 = vmatpush1.bf16.msra.mxu0 0
  %1170 = vmatprep.subr.bf16.mxu0 0
  %1171 = vmatpush1.bf16.msra.mxu0 0
  %1172 = vmatprep.subr.bf16.mxu0 0
  %1173 = vmatpush1.bf16.msra.mxu0 0
  %1174 = vmatprep.subr.bf16.mxu0 0
  %1175 = vmatpush1.bf16.msra.mxu0 0
  %1176 = vmatprep.subr.bf16.mxu0 0
  %1177 = vmatpush1.bf16.msra.mxu0 0
  %1178 = vmatprep.subr.bf16.mxu0 0
  %1179 = vmatpush1.bf16.msra.mxu0 0
  %1180 = vmatprep.subr.bf16.mxu0 0
  %1181 = vmatpush1.bf16.msra.mxu0 0
  %1182 = vmatprep.mubr.bf16.mxu0 0
  %1183 = vmatmul.mubr.bf16.gmra.mrb[0].mxu0 %v1148
  %v1184 = vpop.f32.mrb[0].mxu0
  %v1185 = vadd.f32 %v750, %v1184
  %v1186 = vpop.f32.mrb[0].mxu0
  %v1187 = vadd.f32 %v754, %v1186
  %v1188 = vpop.f32.mrb[0].mxu0
  %v1189 = vadd.f32 %v750, %v1188
  %v1190 = vpop.f32.mrb[0].mxu0
  %v1191 = vadd.f32 %v754, %v1190
  %1192 = vdwg.mxu0
  %1193 = vmatprep.subr.bf16.mxu0 %v1022
  %1194 = vmatpush1.bf16.msra.mxu0 %v1021
  %1195 = vmatprep.subr.bf16.mxu0 %v1038
  %1196 = vmatpush1.bf16.msra.mxu0 %v1037
  %1197 = vmatprep.subr.bf16.mxu0 %v1054
  %1198 = vmatpush1.bf16.msra.mxu0 %v1053
  %1199 = vmatprep.subr.bf16.mxu0 %v1070
  %1200 = vmatpush1.bf16.msra.mxu0 %v1069
  %1201 = vmatprep.subr.bf16.mxu0 0
  %1202 = vmatpush1.bf16.msra.mxu0 0
  %1203 = vmatprep.subr.bf16.mxu0 0
  %1204 = vmatpush1.bf16.msra.mxu0 0
  %1205 = vmatprep.subr.bf16.mxu0 0
  %1206 = vmatpush1.bf16.msra.mxu0 0
  %1207 = vmatprep.subr.bf16.mxu0 0
  %1208 = vmatpush1.bf16.msra.mxu0 0
  %1209 = vmatprep.subr.bf16.mxu0 0
  %1210 = vmatpush1.bf16.msra.mxu0 0
  %1211 = vmatprep.subr.bf16.mxu0 0
  %1212 = vmatpush1.bf16.msra.mxu0 0
  %1213 = vmatprep.subr.bf16.mxu0 0
  %1214 = vmatpush1.bf16.msra.mxu0 0
  %1215 = vmatprep.subr.bf16.mxu0 0
  %1216 = vmatpush1.bf16.msra.mxu0 0
  %1217 = vmatprep.subr.bf16.mxu0 0
  %1218 = vmatpush1.bf16.msra.mxu0 0
  %1219 = vmatprep.subr.bf16.mxu0 0
  %1220 = vmatpush1.bf16.msra.mxu0 0
  %1221 = vmatprep.subr.bf16.mxu0 0
  %1222 = vmatpush1.bf16.msra.mxu0 0
  %1223 = vmatprep.subr.bf16.mxu0 0
  %1224 = vmatpush1.bf16.msra.mxu0 0
  %1225 = vmatprep.mubr.bf16.mxu0 0
  %1226 = vmatmul.mubr.bf16.gmra.mrb[0].mxu0 %v1148
  %v1227 = vpop.f32.mrb[0].mxu0
  %v1228 = vadd.f32 %v758, %v1227
  %v1229 = vpop.f32.mrb[0].mxu0
  %v1230 = vadd.f32 %v762, %v1229
  %v1231 = vpop.f32.mrb[0].mxu0
  %v1232 = vadd.f32 %v758, %v1231
  %v1233 = vpop.f32.mrb[0].mxu0
  %v1234 = vadd.f32 %v762, %v1233
  %1235 = vdwg.mxu0
  %1236 = vmatprep.subr.bf16.mxu0 %v1024
  %1237 = vmatpush1.bf16.msra.mxu0 %v1023
  %1238 = vmatprep.subr.bf16.mxu0 %v1040
  %1239 = vmatpush1.bf16.msra.mxu0 %v1039
  %1240 = vmatprep.subr.bf16.mxu0 %v1056
  %1241 = vmatpush1.bf16.msra.mxu0 %v1055
  %1242 = vmatprep.subr.bf16.mxu0 %v1072
  %1243 = vmatpush1.bf16.msra.mxu0 %v1071
  %1244 = vmatprep.subr.bf16.mxu0 0
  %1245 = vmatpush1.bf16.msra.mxu0 0
  %1246 = vmatprep.subr.bf16.mxu0 0
  %1247 = vmatpush1.bf16.msra.mxu0 0
  %1248 = vmatprep.subr.bf16.mxu0 0
  %1249 = vmatpush1.bf16.msra.mxu0 0
  %1250 = vmatprep.subr.bf16.mxu0 0
  %1251 = vmatpush1.bf16.msra.mxu0 0
  %1252 = vmatprep.subr.bf16.mxu0 0
  %1253 = vmatpush1.bf16.msra.mxu0 0
  %1254 = vmatprep.subr.bf16.mxu0 0
  %1255 = vmatpush1.bf16.msra.mxu0 0
  %1256 = vmatprep.subr.bf16.mxu0 0
  %1257 = vmatpush1.bf16.msra.mxu0 0
  %1258 = vmatprep.subr.bf16.mxu0 0
  %1259 = vmatpush1.bf16.msra.mxu0 0
  %1260 = vmatprep.subr.bf16.mxu0 0
  %1261 = vmatpush1.bf16.msra.mxu0 0
  %1262 = vmatprep.subr.bf16.mxu0 0
  %1263 = vmatpush1.bf16.msra.mxu0 0
  %1264 = vmatprep.subr.bf16.mxu0 0
  %1265 = vmatpush1.bf16.msra.mxu0 0
  %1266 = vmatprep.subr.bf16.mxu0 0
  %1267 = vmatpush1.bf16.msra.mxu0 0
  %1268 = vmatprep.mubr.bf16.mxu0 0
  %1269 = vmatmul.mubr.bf16.gmra.mrb[0].mxu0 %v1148
  %v1270 = vpop.f32.mrb[0].mxu0
  %v1271 = vadd.f32 %v766, %v1270
  %v1272 = vpop.f32.mrb[0].mxu0
  %v1273 = vadd.f32 %v770, %v1272
  %v1274 = vpop.f32.mrb[0].mxu0
  %v1275 = vadd.f32 %v766, %v1274
  %v1276 = vpop.f32.mrb[0].mxu0
  %v1277 = vadd.f32 %v770, %v1276
  %1278 = vdwg.mxu0
  %1279 = vmatprep.subr.bf16.mxu0 %v1026
  %1280 = vmatpush1.bf16.msra.mxu0 %v1025
  %1281 = vmatprep.subr.bf16.mxu0 %v1042
  %1282 = vmatpush1.bf16.msra.mxu0 %v1041
  %1283 = vmatprep.subr.bf16.mxu0 %v1058
  %1284 = vmatpush1.bf16.msra.mxu0 %v1057
  %1285 = vmatprep.subr.bf16.mxu0 %v1074
  %1286 = vmatpush1.bf16.msra.mxu0 %v1073
  %1287 = vmatprep.subr.bf16.mxu0 0
  %1288 = vmatpush1.bf16.msra.mxu0 0
  %1289 = vmatprep.subr.bf16.mxu0 0
  %1290 = vmatpush1.bf16.msra.mxu0 0
  %1291 = vmatprep.subr.bf16.mxu0 0
  %1292 = vmatpush1.bf16.msra.mxu0 0
  %1293 = vmatprep.subr.bf16.mxu0 0
  %1294 = vmatpush1.bf16.msra.mxu0 0
  %1295 = vmatprep.subr.bf16.mxu0 0
  %1296 = vmatpush1.bf16.msra.mxu0 0
  %1297 = vmatprep.subr.bf16.mxu0 0
  %1298 = vmatpush1.bf16.msra.mxu0 0
  %1299 = vmatprep.subr.bf16.mxu0 0
  %1300 = vmatpush1.bf16.msra.mxu0 0
  %1301 = vmatprep.subr.bf16.mxu0 0
  %1302 = vmatpush1.bf16.msra.mxu0 0
  %1303 = vmatprep.subr.bf16.mxu0 0
  %1304 = vmatpush1.bf16.msra.mxu0 0
  %1305 = vmatprep.subr.bf16.mxu0 0
  %1306 = vmatpush1.bf16.msra.mxu0 0
  %1307 = vmatprep.subr.bf16.mxu0 0
  %1308 = vmatpush1.bf16.msra.mxu0 0
  %1309 = vmatprep.subr.bf16.mxu0 0
  %1310 = vmatpush1.bf16.msra.mxu0 0
  %1311 = vmatprep.mubr.bf16.mxu0 0
  %1312 = vmatmul.mubr.bf16.gmra.mrb[0].mxu0 %v1148
  %v1313 = vpop.f32.mrb[0].mxu0
  %v1314 = vadd.f32 %v774, %v1313
  %v1315 = vpop.f32.mrb[0].mxu0
  %v1316 = vadd.f32 %v778, %v1315
  %v1317 = vpop.f32.mrb[0].mxu0
  %v1318 = vadd.f32 %v774, %v1317
  %v1319 = vpop.f32.mrb[0].mxu0
  %v1320 = vadd.f32 %v778, %v1319
  %1321 = vdwg.mxu0
  %1322 = vmatprep.subr.bf16.mxu0 %v1028
  %1323 = vmatpush1.bf16.msra.mxu0 %v1027
  %1324 = vmatprep.subr.bf16.mxu0 %v1044
  %1325 = vmatpush1.bf16.msra.mxu0 %v1043
  %1326 = vmatprep.subr.bf16.mxu0 %v1060
  %1327 = vmatpush1.bf16.msra.mxu0 %v1059
  %1328 = vmatprep.subr.bf16.mxu0 %v1076
  %1329 = vmatpush1.bf16.msra.mxu0 %v1075
  %1330 = vmatprep.subr.bf16.mxu0 0
  %1331 = vmatpush1.bf16.msra.mxu0 0
  %1332 = vmatprep.subr.bf16.mxu0 0
  %1333 = vmatpush1.bf16.msra.mxu0 0
  %1334 = vmatprep.subr.bf16.mxu0 0
  %1335 = vmatpush1.bf16.msra.mxu0 0
  %1336 = vmatprep.subr.bf16.mxu0 0
  %1337 = vmatpush1.bf16.msra.mxu0 0
  %1338 = vmatprep.subr.bf16.mxu0 0
  %1339 = vmatpush1.bf16.msra.mxu0 0
  %1340 = vmatprep.subr.bf16.mxu0 0
  %1341 = vmatpush1.bf16.msra.mxu0 0
  %1342 = vmatprep.subr.bf16.mxu0 0
  %1343 = vmatpush1.bf16.msra.mxu0 0
  %1344 = vmatprep.subr.bf16.mxu0 0
  %1345 = vmatpush1.bf16.msra.mxu0 0
  %1346 = vmatprep.subr.bf16.mxu0 0
  %1347 = vmatpush1.bf16.msra.mxu0 0
  %1348 = vmatprep.subr.bf16.mxu0 0
  %1349 = vmatpush1.bf16.msra.mxu0 0
  %1350 = vmatprep.subr.bf16.mxu0 0
  %1351 = vmatpush1.bf16.msra.mxu0 0
  %1352 = vmatprep.subr.bf16.mxu0 0
  %1353 = vmatpush1.bf16.msra.mxu0 0
  %1354 = vmatprep.mubr.bf16.mxu0 0
  %1355 = vmatmul.mubr.bf16.gmra.mrb[0].mxu0 %v1148
  %v1356 = vpop.f32.mrb[0].mxu0
  %v1357 = vadd.f32 %v782, %v1356
  %v1358 = vpop.f32.mrb[0].mxu0
  %v1359 = vadd.f32 %v786, %v1358
  %v1360 = vpop.f32.mrb[0].mxu0
  %v1361 = vadd.f32 %v782, %v1360
  %v1362 = vpop.f32.mrb[0].mxu0
  %v1363 = vadd.f32 %v786, %v1362
  %1364 = vdwg.mxu0
  %1365 = vmatprep.subr.bf16.mxu0 %v1030
  %1366 = vmatpush1.bf16.msra.mxu0 %v1029
  %1367 = vmatprep.subr.bf16.mxu0 %v1046
  %1368 = vmatpush1.bf16.msra.mxu0 %v1045
  %1369 = vmatprep.subr.bf16.mxu0 %v1062
  %1370 = vmatpush1.bf16.msra.mxu0 %v1061
  %1371 = vmatprep.subr.bf16.mxu0 %v1078
  %1372 = vmatpush1.bf16.msra.mxu0 %v1077
  %1373 = vmatprep.subr.bf16.mxu0 0
  %1374 = vmatpush1.bf16.msra.mxu0 0
  %1375 = vmatprep.subr.bf16.mxu0 0
  %1376 = vmatpush1.bf16.msra.mxu0 0
  %1377 = vmatprep.subr.bf16.mxu0 0
  %1378 = vmatpush1.bf16.msra.mxu0 0
  %1379 = vmatprep.subr.bf16.mxu0 0
  %1380 = vmatpush1.bf16.msra.mxu0 0
  %1381 = vmatprep.subr.bf16.mxu0 0
  %1382 = vmatpush1.bf16.msra.mxu0 0
  %1383 = vmatprep.subr.bf16.mxu0 0
  %1384 = vmatpush1.bf16.msra.mxu0 0
  %1385 = vmatprep.subr.bf16.mxu0 0
  %1386 = vmatpush1.bf16.msra.mxu0 0
  %1387 = vmatprep.subr.bf16.mxu0 0
  %1388 = vmatpush1.bf16.msra.mxu0 0
  %1389 = vmatprep.subr.bf16.mxu0 0
  %1390 = vmatpush1.bf16.msra.mxu0 0
  %1391 = vmatprep.subr.bf16.mxu0 0
  %1392 = vmatpush1.bf16.msra.mxu0 0
  %1393 = vmatprep.subr.bf16.mxu0 0
  %1394 = vmatpush1.bf16.msra.mxu0 0
  %1395 = vmatprep.subr.bf16.mxu0 0
  %1396 = vmatpush1.bf16.msra.mxu0 0
  %1397 = vmatprep.mubr.bf16.mxu0 0
  %1398 = vmatmul.mubr.bf16.gmra.mrb[0].mxu0 %v1148
  %v1399 = vpop.f32.mrb[0].mxu0
  %v1400 = vadd.f32 %v790, %v1399
  %v1401 = vpop.f32.mrb[0].mxu0
  %v1402 = vadd.f32 %v794, %v1401
  %v1403 = vpop.f32.mrb[0].mxu0
  %v1404 = vadd.f32 %v790, %v1403
  %v1405 = vpop.f32.mrb[0].mxu0
  %v1406 = vadd.f32 %v794, %v1405
  %1407 = vdwg.mxu0
  %1408 = vmatprep.subr.bf16.mxu0 %v1032
  %1409 = vmatpush1.bf16.msra.mxu0 %v1031
  %1410 = vmatprep.subr.bf16.mxu0 %v1048
  %1411 = vmatpush1.bf16.msra.mxu0 %v1047
  %1412 = vmatprep.subr.bf16.mxu0 %v1064
  %1413 = vmatpush1.bf16.msra.mxu0 %v1063
  %1414 = vmatprep.subr.bf16.mxu0 %v1080
  %1415 = vmatpush1.bf16.msra.mxu0 %v1079
  %1416 = vmatprep.subr.bf16.mxu0 0
  %1417 = vmatpush1.bf16.msra.mxu0 0
  %1418 = vmatprep.subr.bf16.mxu0 0
  %1419 = vmatpush1.bf16.msra.mxu0 0
  %1420 = vmatprep.subr.bf16.mxu0 0
  %1421 = vmatpush1.bf16.msra.mxu0 0
  %1422 = vmatprep.subr.bf16.mxu0 0
  %1423 = vmatpush1.bf16.msra.mxu0 0
  %1424 = vmatprep.subr.bf16.mxu0 0
  %1425 = vmatpush1.bf16.msra.mxu0 0
  %1426 = vmatprep.subr.bf16.mxu0 0
  %1427 = vmatpush1.bf16.msra.mxu0 0
  %1428 = vmatprep.subr.bf16.mxu0 0
  %1429 = vmatpush1.bf16.msra.mxu0 0
  %1430 = vmatprep.subr.bf16.mxu0 0
  %1431 = vmatpush1.bf16.msra.mxu0 0
  %1432 = vmatprep.subr.bf16.mxu0 0
  %1433 = vmatpush1.bf16.msra.mxu0 0
  %1434 = vmatprep.subr.bf16.mxu0 0
  %1435 = vmatpush1.bf16.msra.mxu0 0
  %1436 = vmatprep.subr.bf16.mxu0 0
  %1437 = vmatpush1.bf16.msra.mxu0 0
  %1438 = vmatprep.subr.bf16.mxu0 0
  %1439 = vmatpush1.bf16.msra.mxu0 0
  %1440 = vmatprep.mubr.bf16.mxu0 0
  %1441 = vmatmul.mubr.bf16.gmra.mrb[0].mxu0 %v1148
  %v1442 = vpop.f32.mrb[0].mxu0
  %v1443 = vadd.f32 %v798, %v1442
  %v1444 = vpop.f32.mrb[0].mxu0
  %v1445 = vadd.f32 %v802, %v1444
  %v1446 = vpop.f32.mrb[0].mxu0
  %v1447 = vadd.f32 %v798, %v1446
  %v1448 = vpop.f32.mrb[0].mxu0
  %v1449 = vadd.f32 %v802, %v1448
  %1450 = vdwg.mxu0
  %1451 = vmatprep.subr.bf16.mxu0 %v1034
  %1452 = vmatpush1.bf16.msra.mxu0 %v1033
  %1453 = vmatprep.subr.bf16.mxu0 %v1050
  %1454 = vmatpush1.bf16.msra.mxu0 %v1049
  %1455 = vmatprep.subr.bf16.mxu0 %v1066
  %1456 = vmatpush1.bf16.msra.mxu0 %v1065
  %1457 = vmatprep.subr.bf16.mxu0 %v1082
  %1458 = vmatpush1.bf16.msra.mxu0 %v1081
  %1459 = vmatprep.subr.bf16.mxu0 0
  %1460 = vmatpush1.bf16.msra.mxu0 0
  %1461 = vmatprep.subr.bf16.mxu0 0
  %1462 = vmatpush1.bf16.msra.mxu0 0
  %1463 = vmatprep.subr.bf16.mxu0 0
  %1464 = vmatpush1.bf16.msra.mxu0 0
  %1465 = vmatprep.subr.bf16.mxu0 0
  %1466 = vmatpush1.bf16.msra.mxu0 0
  %1467 = vmatprep.subr.bf16.mxu0 0
  %1468 = vmatpush1.bf16.msra.mxu0 0
  %1469 = vmatprep.subr.bf16.mxu0 0
  %1470 = vmatpush1.bf16.msra.mxu0 0
  %1471 = vmatprep.subr.bf16.mxu0 0
  %1472 = vmatpush1.bf16.msra.mxu0 0
  %1473 = vmatprep.subr.bf16.mxu0 0
  %1474 = vmatpush1.bf16.msra.mxu0 0
  %1475 = vmatprep.subr.bf16.mxu0 0
  %1476 = vmatpush1.bf16.msra.mxu0 0
  %1477 = vmatprep.subr.bf16.mxu0 0
  %1478 = vmatpush1.bf16.msra.mxu0 0
  %1479 = vmatprep.subr.bf16.mxu0 0
  %1480 = vmatpush1.bf16.msra.mxu0 0
  %1481 = vmatprep.subr.bf16.mxu0 0
  %1482 = vmatpush1.bf16.msra.mxu0 0
  %1483 = vmatprep.mubr.bf16.mxu0 0
  %1484 = vmatmul.mubr.bf16.gmra.mrb[0].mxu0 %v1148
  %v1485 = vpop.f32.mrb[0].mxu0
  %v1486 = vadd.f32 %v806, %v1485
  %v1487 = vpop.f32.mrb[0].mxu0
  %v1488 = vadd.f32 %v810, %v1487
  %v1489 = vpop.f32.mrb[0].mxu0
  %v1490 = vadd.f32 %v806, %v1489
  %v1491 = vpop.f32.mrb[0].mxu0
  %v1492 = vadd.f32 %v810, %v1491
  %1493 = vdwg.mxu0
  %v1494 = vmax.f32 %v1185, 0.0
  %v1495 = vmax.f32 %v1187, 0.0
  %v1496 = vmax.f32 %v1228, 0.0
  %v1497 = vmax.f32 %v1230, 0.0
  %v1498 = vmax.f32 %v1271, 0.0
  %v1499 = vmax.f32 %v1273, 0.0
  %v1500 = vmax.f32 %v1314, 0.0
  %v1501 = vmax.f32 %v1316, 0.0
  %v1502 = vmax.f32 %v1357, 0.0
  %v1503 = vmax.f32 %v1359, 0.0
  %v1504 = vmax.f32 %v1400, 0.0
  %v1505 = vmax.f32 %v1402, 0.0
  %v1506 = vmax.f32 %v1443, 0.0
  %v1507 = vmax.f32 %v1445, 0.0
  %v1508 = vmax.f32 %v1486, 0.0
  %v1509 = vmax.f32 %v1488, 0.0
  %v1510 = vmax.f32 %v1189, 0.0
  %v1511 = vmax.f32 %v1191, 0.0
  %v1512 = vmax.f32 %v1232, 0.0
  %v1513 = vmax.f32 %v1234, 0.0
  %v1514 = vmax.f32 %v1275, 0.0
  %v1515 = vmax.f32 %v1277, 0.0
  %v1516 = vmax.f32 %v1318, 0.0
  %v1517 = vmax.f32 %v1320, 0.0
  %v1518 = vmax.f32 %v1361, 0.0
  %v1519 = vmax.f32 %v1363, 0.0
  %v1520 = vmax.f32 %v1404, 0.0
  %v1521 = vmax.f32 %v1406, 0.0
  %v1522 = vmax.f32 %v1447, 0.0
  %v1523 = vmax.f32 %v1449, 0.0
  %v1524 = vmax.f32 %v1490, 0.0
  %v1525 = vmax.f32 %v1492, 0.0
  %v1526 = vpack.c.bf16 %v1510, %v1494
  %v1527 = vpack.c.bf16 %v1511, %v1495
  %v1528 = vpack.c.bf16 %v1512, %v1496
  %v1529 = vpack.c.bf16 %v1513, %v1497
  %v1530 = vpack.c.bf16 %v1514, %v1498
  %v1531 = vpack.c.bf16 %v1515, %v1499
  %v1532 = vpack.c.bf16 %v1516, %v1500
  %v1533 = vpack.c.bf16 %v1517, %v1501
  %v1534 = vpack.c.bf16 %v1518, %v1502
  %v1535 = vpack.c.bf16 %v1519, %v1503
  %v1536 = vpack.c.bf16 %v1520, %v1504
  %v1537 = vpack.c.bf16 %v1521, %v1505
  %v1538 = vpack.c.bf16 %v1522, %v1506
  %v1539 = vpack.c.bf16 %v1523, %v1507
  %v1540 = vpack.c.bf16 %v1524, %v1508
  %v1541 = vpack.c.bf16 %v1525, %v1509
  %v1542 = vld [vmem:[%s14] sm:$0xf]
  %v1543 = vld [vmem:[%s14 + $0x4] sm:$0xf]
  %v1544 = vld [vmem:[%s14 + $0x8] sm:$0xf]
  %v1545 = vld [vmem:[%s14 + $0xc] sm:$0xf]
  %v1546 = vld [vmem:[%s14 + $0x10] sm:$0xf]
  %v1547 = vld [vmem:[%s14 + $0x14] sm:$0xf]
  %v1548 = vld [vmem:[%s14 + $0x18] sm:$0xf]
  %v1549 = vld [vmem:[%s14 + $0x1c] sm:$0xf]
  %v1550 = vld [vmem:[%s14 + $0x20] sm:$0xf]
  %v1551 = vld [vmem:[%s14 + $0x24] sm:$0xf]
  %v1552 = vld [vmem:[%s14 + $0x28] sm:$0xf]
  %v1553 = vld [vmem:[%s14 + $0x2c] sm:$0xf]
  %v1554 = vld [vmem:[%s14 + $0x30] sm:$0xf]
  %v1555 = vld [vmem:[%s14 + $0x34] sm:$0xf]
  %v1556 = vld [vmem:[%s14 + $0x38] sm:$0xf]
  %v1557 = vld [vmem:[%s14 + $0x3c] sm:$0xf]
  %v1558 = vld [vmem:[%s14 + $0x40] sm:$0xf]
  %v1559 = vld [vmem:[%s14 + $0x44] sm:$0xf]
  %v1560 = vld [vmem:[%s14 + $0x48] sm:$0xf]
  %v1561 = vld [vmem:[%s14 + $0x4c] sm:$0xf]
  %v1562 = vld [vmem:[%s14 + $0x50] sm:$0xf]
  %v1563 = vld [vmem:[%s14 + $0x54] sm:$0xf]
  %v1564 = vld [vmem:[%s14 + $0x58] sm:$0xf]
  %v1565 = vld [vmem:[%s14 + $0x5c] sm:$0xf]
  %v1566 = vld [vmem:[%s14 + $0x60] sm:$0xf]
  %v1567 = vld [vmem:[%s14 + $0x64] sm:$0xf]
  %v1568 = vld [vmem:[%s14 + $0x68] sm:$0xf]
  %v1569 = vld [vmem:[%s14 + $0x6c] sm:$0xf]
  %v1570 = vld [vmem:[%s14 + $0x70] sm:$0xf]
  %v1571 = vld [vmem:[%s14 + $0x74] sm:$0xf]
  %v1572 = vld [vmem:[%s14 + $0x78] sm:$0xf]
  %v1573 = vld [vmem:[%s14 + $0x7c] sm:$0xf]
  %v1574 = vld [vmem:[%s14 + $0x80] sm:$0xf]
  %v1575 = vld [vmem:[%s14 + $0x84] sm:$0xf]
  %v1576 = vld [vmem:[%s14 + $0x88] sm:$0xf]
  %v1577 = vld [vmem:[%s14 + $0x8c] sm:$0xf]
  %v1578 = vld [vmem:[%s14 + $0x90] sm:$0xf]
  %v1579 = vld [vmem:[%s14 + $0x94] sm:$0xf]
  %v1580 = vld [vmem:[%s14 + $0x98] sm:$0xf]
  %v1581 = vld [vmem:[%s14 + $0x9c] sm:$0xf]
  %v1582 = vld [vmem:[%s14 + $0xa0] sm:$0xf]
  %v1583 = vld [vmem:[%s14 + $0xa4] sm:$0xf]
  %v1584 = vld [vmem:[%s14 + $0xa8] sm:$0xf]
  %v1585 = vld [vmem:[%s14 + $0xac] sm:$0xf]
  %v1586 = vld [vmem:[%s14 + $0xb0] sm:$0xf]
  %v1587 = vld [vmem:[%s14 + $0xb4] sm:$0xf]
  %v1588 = vld [vmem:[%s14 + $0xb8] sm:$0xf]
  %v1589 = vld [vmem:[%s14 + $0xbc] sm:$0xf]
  %v1590 = vld [vmem:[%s14 + $0xc0] sm:$0xf]
  %v1591 = vld [vmem:[%s14 + $0xc4] sm:$0xf]
  %v1592 = vld [vmem:[%s14 + $0xc8] sm:$0xf]
  %v1593 = vld [vmem:[%s14 + $0xcc] sm:$0xf]
  %v1594 = vld [vmem:[%s14 + $0xd0] sm:$0xf]
  %v1595 = vld [vmem:[%s14 + $0xd4] sm:$0xf]
  %v1596 = vld [vmem:[%s14 + $0xd8] sm:$0xf]
  %v1597 = vld [vmem:[%s14 + $0xdc] sm:$0xf]
  %v1598 = vld [vmem:[%s14 + $0xe0] sm:$0xf]
  %v1599 = vld [vmem:[%s14 + $0xe4] sm:$0xf]
  %v1600 = vld [vmem:[%s14 + $0xe8] sm:$0xf]
  %v1601 = vld [vmem:[%s14 + $0xec] sm:$0xf]
  %v1602 = vld [vmem:[%s14 + $0xf0] sm:$0xf]
  %v1603 = vld [vmem:[%s14 + $0xf4] sm:$0xf]
  %v1604 = vld [vmem:[%s14 + $0xf8] sm:$0xf]
  %v1605 = vld [vmem:[%s14 + $0xfc] sm:$0xf]
  %v1606 = vld [vmem:[%s14 + $0x100] sm:$0xf]
  %v1607 = vld [vmem:[%s14 + $0x104] sm:$0xf]
  %v1608 = vld [vmem:[%s14 + $0x108] sm:$0xf]
  %v1609 = vld [vmem:[%s14 + $0x10c] sm:$0xf]
  %v1610 = vld [vmem:[%s14 + $0x110] sm:$0xf]
  %v1611 = vld [vmem:[%s14 + $0x114] sm:$0xf]
  %v1612 = vld [vmem:[%s14 + $0x118] sm:$0xf]
  %v1613 = vld [vmem:[%s14 + $0x11c] sm:$0xf]
  %v1614 = vld [vmem:[%s14 + $0x120] sm:$0xf]
  %v1615 = vld [vmem:[%s14 + $0x124] sm:$0xf]
  %v1616 = vld [vmem:[%s14 + $0x128] sm:$0xf]
  %v1617 = vld [vmem:[%s14 + $0x12c] sm:$0xf]
  %v1618 = vld [vmem:[%s14 + $0x130] sm:$0xf]
  %v1619 = vld [vmem:[%s14 + $0x134] sm:$0xf]
  %v1620 = vld [vmem:[%s14 + $0x138] sm:$0xf]
  %v1621 = vld [vmem:[%s14 + $0x13c] sm:$0xf]
  %v1622 = vld [vmem:[%s14 + $0x140] sm:$0xf]
  %v1623 = vld [vmem:[%s14 + $0x144] sm:$0xf]
  %v1624 = vld [vmem:[%s14 + $0x148] sm:$0xf]
  %v1625 = vld [vmem:[%s14 + $0x14c] sm:$0xf]
  %v1626 = vld [vmem:[%s14 + $0x150] sm:$0xf]
  %v1627 = vld [vmem:[%s14 + $0x154] sm:$0xf]
  %v1628 = vld [vmem:[%s14 + $0x158] sm:$0xf]
  %v1629 = vld [vmem:[%s14 + $0x15c] sm:$0xf]
  %v1630 = vld [vmem:[%s14 + $0x160] sm:$0xf]
  %v1631 = vld [vmem:[%s14 + $0x164] sm:$0xf]
  %v1632 = vld [vmem:[%s14 + $0x168] sm:$0xf]
  %v1633 = vld [vmem:[%s14 + $0x16c] sm:$0xf]
  %v1634 = vld [vmem:[%s14 + $0x170] sm:$0xf]
  %v1635 = vld [vmem:[%s14 + $0x174] sm:$0xf]
  %v1636 = vld [vmem:[%s14 + $0x178] sm:$0xf]
  %v1637 = vld [vmem:[%s14 + $0x17c] sm:$0xf]
  %v1638 = vld [vmem:[%s14 + $0x180] sm:$0xf]
  %v1639 = vld [vmem:[%s14 + $0x184] sm:$0xf]
  %v1640 = vld [vmem:[%s14 + $0x188] sm:$0xf]
  %v1641 = vld [vmem:[%s14 + $0x18c] sm:$0xf]
  %v1642 = vld [vmem:[%s14 + $0x190] sm:$0xf]
  %v1643 = vld [vmem:[%s14 + $0x194] sm:$0xf]
  %v1644 = vld [vmem:[%s14 + $0x198] sm:$0xf]
  %v1645 = vld [vmem:[%s14 + $0x19c] sm:$0xf]
  %v1646 = vld [vmem:[%s14 + $0x1a0] sm:$0xf]
  %v1647 = vld [vmem:[%s14 + $0x1a4] sm:$0xf]
  %v1648 = vld [vmem:[%s14 + $0x1a8] sm:$0xf]
  %v1649 = vld [vmem:[%s14 + $0x1ac] sm:$0xf]
  %v1650 = vld [vmem:[%s14 + $0x1b0] sm:$0xf]
  %v1651 = vld [vmem:[%s14 + $0x1b4] sm:$0xf]
  %v1652 = vld [vmem:[%s14 + $0x1b8] sm:$0xf]
  %v1653 = vld [vmem:[%s14 + $0x1bc] sm:$0xf]
  %v1654 = vld [vmem:[%s14 + $0x1c0] sm:$0xf]
  %v1655 = vld [vmem:[%s14 + $0x1c4] sm:$0xf]
  %v1656 = vld [vmem:[%s14 + $0x1c8] sm:$0xf]
  %v1657 = vld [vmem:[%s14 + $0x1cc] sm:$0xf]
  %v1658 = vld [vmem:[%s14 + $0x1d0] sm:$0xf]
  %v1659 = vld [vmem:[%s14 + $0x1d4] sm:$0xf]
  %v1660 = vld [vmem:[%s14 + $0x1d8] sm:$0xf]
  %v1661 = vld [vmem:[%s14 + $0x1dc] sm:$0xf]
  %v1662 = vld [vmem:[%s14 + $0x1e0] sm:$0xf]
  %v1663 = vld [vmem:[%s14 + $0x1e4] sm:$0xf]
  %v1664 = vld [vmem:[%s14 + $0x1e8] sm:$0xf]
  %v1665 = vld [vmem:[%s14 + $0x1ec] sm:$0xf]
  %v1666 = vld [vmem:[%s14 + $0x1f0] sm:$0xf]
  %v1667 = vld [vmem:[%s14 + $0x1f4] sm:$0xf]
  %v1668 = vld [vmem:[%s14 + $0x1f8] sm:$0xf]
  %v1669 = vld [vmem:[%s14 + $0x1fc] sm:$0xf]
  %v1670 = vld [vmem:[%s14 + $0x200] sm:$0xf]
  %v1671 = vld [vmem:[%s14 + $0x204] sm:$0xf]
  %v1672 = vld [vmem:[%s14 + $0x208] sm:$0xf]
  %v1673 = vld [vmem:[%s14 + $0x20c] sm:$0xf]
  %v1674 = vld [vmem:[%s14 + $0x210] sm:$0xf]
  %v1675 = vld [vmem:[%s14 + $0x214] sm:$0xf]
  %v1676 = vld [vmem:[%s14 + $0x218] sm:$0xf]
  %v1677 = vld [vmem:[%s14 + $0x21c] sm:$0xf]
  %v1678 = vld [vmem:[%s14 + $0x220] sm:$0xf]
  %v1679 = vld [vmem:[%s14 + $0x224] sm:$0xf]
  %v1680 = vld [vmem:[%s14 + $0x228] sm:$0xf]
  %v1681 = vld [vmem:[%s14 + $0x22c] sm:$0xf]
  %v1682 = vld [vmem:[%s14 + $0x230] sm:$0xf]
  %v1683 = vld [vmem:[%s14 + $0x234] sm:$0xf]
  %v1684 = vld [vmem:[%s14 + $0x238] sm:$0xf]
  %v1685 = vld [vmem:[%s14 + $0x23c] sm:$0xf]
  %v1686 = vld [vmem:[%s14 + $0x240] sm:$0xf]
  %v1687 = vld [vmem:[%s14 + $0x244] sm:$0xf]
  %v1688 = vld [vmem:[%s14 + $0x248] sm:$0xf]
  %v1689 = vld [vmem:[%s14 + $0x24c] sm:$0xf]
  %v1690 = vld [vmem:[%s14 + $0x250] sm:$0xf]
  %v1691 = vld [vmem:[%s14 + $0x254] sm:$0xf]
  %v1692 = vld [vmem:[%s14 + $0x258] sm:$0xf]
  %v1693 = vld [vmem:[%s14 + $0x25c] sm:$0xf]
  %v1694 = vld [vmem:[%s14 + $0x260] sm:$0xf]
  %v1695 = vld [vmem:[%s14 + $0x264] sm:$0xf]
  %v1696 = vld [vmem:[%s14 + $0x268] sm:$0xf]
  %v1697 = vld [vmem:[%s14 + $0x26c] sm:$0xf]
  %v1698 = vld [vmem:[%s14 + $0x270] sm:$0xf]
  %v1699 = vld [vmem:[%s14 + $0x274] sm:$0xf]
  %v1700 = vld [vmem:[%s14 + $0x278] sm:$0xf]
  %v1701 = vld [vmem:[%s14 + $0x27c] sm:$0xf]
  %v1702 = vld [vmem:[%s14 + $0x280] sm:$0xf]
  %v1703 = vld [vmem:[%s14 + $0x284] sm:$0xf]
  %v1704 = vld [vmem:[%s14 + $0x288] sm:$0xf]
  %v1705 = vld [vmem:[%s14 + $0x28c] sm:$0xf]
  %v1706 = vld [vmem:[%s14 + $0x290] sm:$0xf]
  %v1707 = vld [vmem:[%s14 + $0x294] sm:$0xf]
  %v1708 = vld [vmem:[%s14 + $0x298] sm:$0xf]
  %v1709 = vld [vmem:[%s14 + $0x29c] sm:$0xf]
  %v1710 = vld [vmem:[%s14 + $0x2a0] sm:$0xf]
  %v1711 = vld [vmem:[%s14 + $0x2a4] sm:$0xf]
  %v1712 = vld [vmem:[%s14 + $0x2a8] sm:$0xf]
  %v1713 = vld [vmem:[%s14 + $0x2ac] sm:$0xf]
  %v1714 = vld [vmem:[%s14 + $0x2b0] sm:$0xf]
  %v1715 = vld [vmem:[%s14 + $0x2b4] sm:$0xf]
  %v1716 = vld [vmem:[%s14 + $0x2b8] sm:$0xf]
  %v1717 = vld [vmem:[%s14 + $0x2bc] sm:$0xf]
  %v1718 = vld [vmem:[%s14 + $0x2c0] sm:$0xf]
  %v1719 = vld [vmem:[%s14 + $0x2c4] sm:$0xf]
  %v1720 = vld [vmem:[%s14 + $0x2c8] sm:$0xf]
  %v1721 = vld [vmem:[%s14 + $0x2cc] sm:$0xf]
  %v1722 = vld [vmem:[%s14 + $0x2d0] sm:$0xf]
  %v1723 = vld [vmem:[%s14 + $0x2d4] sm:$0xf]
  %v1724 = vld [vmem:[%s14 + $0x2d8] sm:$0xf]
  %v1725 = vld [vmem:[%s14 + $0x2dc] sm:$0xf]
  %v1726 = vld [vmem:[%s14 + $0x2e0] sm:$0xf]
  %v1727 = vld [vmem:[%s14 + $0x2e4] sm:$0xf]
  %v1728 = vld [vmem:[%s14 + $0x2e8] sm:$0xf]
  %v1729 = vld [vmem:[%s14 + $0x2ec] sm:$0xf]
  %v1730 = vld [vmem:[%s14 + $0x2f0] sm:$0xf]
  %v1731 = vld [vmem:[%s14 + $0x2f4] sm:$0xf]
  %v1732 = vld [vmem:[%s14 + $0x2f8] sm:$0xf]
  %v1733 = vld [vmem:[%s14 + $0x2fc] sm:$0xf]
  %v1734 = vld [vmem:[%s14 + $0x300] sm:$0xf]
  %v1735 = vld [vmem:[%s14 + $0x304] sm:$0xf]
  %v1736 = vld [vmem:[%s14 + $0x308] sm:$0xf]
  %v1737 = vld [vmem:[%s14 + $0x30c] sm:$0xf]
  %v1738 = vld [vmem:[%s14 + $0x310] sm:$0xf]
  %v1739 = vld [vmem:[%s14 + $0x314] sm:$0xf]
  %v1740 = vld [vmem:[%s14 + $0x318] sm:$0xf]
  %v1741 = vld [vmem:[%s14 + $0x31c] sm:$0xf]
  %v1742 = vld [vmem:[%s14 + $0x320] sm:$0xf]
  %v1743 = vld [vmem:[%s14 + $0x324] sm:$0xf]
  %v1744 = vld [vmem:[%s14 + $0x328] sm:$0xf]
  %v1745 = vld [vmem:[%s14 + $0x32c] sm:$0xf]
  %v1746 = vld [vmem:[%s14 + $0x330] sm:$0xf]
  %v1747 = vld [vmem:[%s14 + $0x334] sm:$0xf]
  %v1748 = vld [vmem:[%s14 + $0x338] sm:$0xf]
  %v1749 = vld [vmem:[%s14 + $0x33c] sm:$0xf]
  %v1750 = vld [vmem:[%s14 + $0x340] sm:$0xf]
  %v1751 = vld [vmem:[%s14 + $0x344] sm:$0xf]
  %v1752 = vld [vmem:[%s14 + $0x348] sm:$0xf]
  %v1753 = vld [vmem:[%s14 + $0x34c] sm:$0xf]
  %v1754 = vld [vmem:[%s14 + $0x350] sm:$0xf]
  %v1755 = vld [vmem:[%s14 + $0x354] sm:$0xf]
  %v1756 = vld [vmem:[%s14 + $0x358] sm:$0xf]
  %v1757 = vld [vmem:[%s14 + $0x35c] sm:$0xf]
  %v1758 = vld [vmem:[%s14 + $0x360] sm:$0xf]
  %v1759 = vld [vmem:[%s14 + $0x364] sm:$0xf]
  %v1760 = vld [vmem:[%s14 + $0x368] sm:$0xf]
  %v1761 = vld [vmem:[%s14 + $0x36c] sm:$0xf]
  %v1762 = vld [vmem:[%s14 + $0x370] sm:$0xf]
  %v1763 = vld [vmem:[%s14 + $0x374] sm:$0xf]
  %v1764 = vld [vmem:[%s14 + $0x378] sm:$0xf]
  %v1765 = vld [vmem:[%s14 + $0x37c] sm:$0xf]
  %v1766 = vld [vmem:[%s14 + $0x380] sm:$0xf]
  %v1767 = vld [vmem:[%s14 + $0x384] sm:$0xf]
  %v1768 = vld [vmem:[%s14 + $0x388] sm:$0xf]
  %v1769 = vld [vmem:[%s14 + $0x38c] sm:$0xf]
  %v1770 = vld [vmem:[%s14 + $0x390] sm:$0xf]
  %v1771 = vld [vmem:[%s14 + $0x394] sm:$0xf]
  %v1772 = vld [vmem:[%s14 + $0x398] sm:$0xf]
  %v1773 = vld [vmem:[%s14 + $0x39c] sm:$0xf]
  %v1774 = vld [vmem:[%s14 + $0x3a0] sm:$0xf]
  %v1775 = vld [vmem:[%s14 + $0x3a4] sm:$0xf]
  %v1776 = vld [vmem:[%s14 + $0x3a8] sm:$0xf]
  %v1777 = vld [vmem:[%s14 + $0x3ac] sm:$0xf]
  %v1778 = vld [vmem:[%s14 + $0x3b0] sm:$0xf]
  %v1779 = vld [vmem:[%s14 + $0x3b4] sm:$0xf]
  %v1780 = vld [vmem:[%s14 + $0x3b8] sm:$0xf]
  %v1781 = vld [vmem:[%s14 + $0x3bc] sm:$0xf]
  %v1782 = vld [vmem:[%s14 + $0x3c0] sm:$0xf]
  %v1783 = vld [vmem:[%s14 + $0x3c4] sm:$0xf]
  %v1784 = vld [vmem:[%s14 + $0x3c8] sm:$0xf]
  %v1785 = vld [vmem:[%s14 + $0x3cc] sm:$0xf]
  %v1786 = vld [vmem:[%s14 + $0x3d0] sm:$0xf]
  %v1787 = vld [vmem:[%s14 + $0x3d4] sm:$0xf]
  %v1788 = vld [vmem:[%s14 + $0x3d8] sm:$0xf]
  %v1789 = vld [vmem:[%s14 + $0x3dc] sm:$0xf]
  %v1790 = vld [vmem:[%s14 + $0x3e0] sm:$0xf]
  %v1791 = vld [vmem:[%s14 + $0x3e4] sm:$0xf]
  %v1792 = vld [vmem:[%s14 + $0x3e8] sm:$0xf]
  %v1793 = vld [vmem:[%s14 + $0x3ec] sm:$0xf]
  %v1794 = vld [vmem:[%s14 + $0x3f0] sm:$0xf]
  %v1795 = vld [vmem:[%s14 + $0x3f4] sm:$0xf]
  %v1796 = vld [vmem:[%s14 + $0x3f8] sm:$0xf]
  %v1797 = vld [vmem:[%s14 + $0x3fc] sm:$0xf]
  %v1798 = vld [vmem:[%s15] sm:$0x1]
  %v1800 = vlaneseq
  %v1801 = vshrl.u32 %v1800, 7
  %v1802 = vsub.s32 0, %v1801
  %v1803 = vrot.slane %v1798, %v1802
  %v2061 = vunpack.c.l.b16 %v1542
  %v2062 = vunpack.c.l.b16 %v1543
  %v2063 = vunpack.c.l.b16 %v1544
  %v2064 = vunpack.c.l.b16 %v1545
  %v2065 = vunpack.c.l.b16 %v1546
  %v2066 = vunpack.c.l.b16 %v1547
  %v2067 = vunpack.c.l.b16 %v1548
  %v2068 = vunpack.c.l.b16 %v1549
  %v2069 = vunpack.c.l.b16 %v1550
  %v2070 = vunpack.c.l.b16 %v1551
  %v2071 = vunpack.c.l.b16 %v1552
  %v2072 = vunpack.c.l.b16 %v1553
  %v2073 = vunpack.c.l.b16 %v1554
  %v2074 = vunpack.c.l.b16 %v1555
  %v2075 = vunpack.c.l.b16 %v1556
  %v2076 = vunpack.c.l.b16 %v1557
  %v2077 = vunpack.c.l.b16 %v1558
  %v2078 = vunpack.c.l.b16 %v1559
  %v2079 = vunpack.c.l.b16 %v1560
  %v2080 = vunpack.c.l.b16 %v1561
  %v2081 = vunpack.c.l.b16 %v1562
  %v2082 = vunpack.c.l.b16 %v1563
  %v2083 = vunpack.c.l.b16 %v1564
  %v2084 = vunpack.c.l.b16 %v1565
  %v2085 = vunpack.c.l.b16 %v1566
  %v2086 = vunpack.c.l.b16 %v1567
  %v2087 = vunpack.c.l.b16 %v1568
  %v2088 = vunpack.c.l.b16 %v1569
  %v2089 = vunpack.c.l.b16 %v1570
  %v2090 = vunpack.c.l.b16 %v1571
  %v2091 = vunpack.c.l.b16 %v1572
  %v2092 = vunpack.c.l.b16 %v1573
  %v2093 = vunpack.c.l.b16 %v1574
  %v2094 = vunpack.c.l.b16 %v1575
  %v2095 = vunpack.c.l.b16 %v1576
  %v2096 = vunpack.c.l.b16 %v1577
  %v2097 = vunpack.c.l.b16 %v1578
  %v2098 = vunpack.c.l.b16 %v1579
  %v2099 = vunpack.c.l.b16 %v1580
  %v2100 = vunpack.c.l.b16 %v1581
  %v2101 = vunpack.c.l.b16 %v1582
  %v2102 = vunpack.c.l.b16 %v1583
  %v2103 = vunpack.c.l.b16 %v1584
  %v2104 = vunpack.c.l.b16 %v1585
  %v2105 = vunpack.c.l.b16 %v1586
  %v2106 = vunpack.c.l.b16 %v1587
  %v2107 = vunpack.c.l.b16 %v1588
  %v2108 = vunpack.c.l.b16 %v1589
  %v2109 = vunpack.c.l.b16 %v1590
  %v2110 = vunpack.c.l.b16 %v1591
  %v2111 = vunpack.c.l.b16 %v1592
  %v2112 = vunpack.c.l.b16 %v1593
  %v2113 = vunpack.c.l.b16 %v1594
  %v2114 = vunpack.c.l.b16 %v1595
  %v2115 = vunpack.c.l.b16 %v1596
  %v2116 = vunpack.c.l.b16 %v1597
  %v2117 = vunpack.c.l.b16 %v1598
  %v2118 = vunpack.c.l.b16 %v1599
  %v2119 = vunpack.c.l.b16 %v1600
  %v2120 = vunpack.c.l.b16 %v1601
  %v2121 = vunpack.c.l.b16 %v1602
  %v2122 = vunpack.c.l.b16 %v1603
  %v2123 = vunpack.c.l.b16 %v1604
  %v2124 = vunpack.c.l.b16 %v1605
  %v2125 = vunpack.c.l.b16 %v1606
  %v2126 = vunpack.c.l.b16 %v1607
  %v2127 = vunpack.c.l.b16 %v1608
  %v2128 = vunpack.c.l.b16 %v1609
  %v2129 = vunpack.c.l.b16 %v1610
  %v2130 = vunpack.c.l.b16 %v1611
  %v2131 = vunpack.c.l.b16 %v1612
  %v2132 = vunpack.c.l.b16 %v1613
  %v2133 = vunpack.c.l.b16 %v1614
  %v2134 = vunpack.c.l.b16 %v1615
  %v2135 = vunpack.c.l.b16 %v1616
  %v2136 = vunpack.c.l.b16 %v1617
  %v2137 = vunpack.c.l.b16 %v1618
  %v2138 = vunpack.c.l.b16 %v1619
  %v2139 = vunpack.c.l.b16 %v1620
  %v2140 = vunpack.c.l.b16 %v1621
  %v2141 = vunpack.c.l.b16 %v1622
  %v2142 = vunpack.c.l.b16 %v1623
  %v2143 = vunpack.c.l.b16 %v1624
  %v2144 = vunpack.c.l.b16 %v1625
  %v2145 = vunpack.c.l.b16 %v1626
  %v2146 = vunpack.c.l.b16 %v1627
  %v2147 = vunpack.c.l.b16 %v1628
  %v2148 = vunpack.c.l.b16 %v1629
  %v2149 = vunpack.c.l.b16 %v1630
  %v2150 = vunpack.c.l.b16 %v1631
  %v2151 = vunpack.c.l.b16 %v1632
  %v2152 = vunpack.c.l.b16 %v1633
  %v2153 = vunpack.c.l.b16 %v1634
  %v2154 = vunpack.c.l.b16 %v1635
  %v2155 = vunpack.c.l.b16 %v1636
  %v2156 = vunpack.c.l.b16 %v1637
  %v2157 = vunpack.c.l.b16 %v1638
  %v2158 = vunpack.c.l.b16 %v1639
  %v2159 = vunpack.c.l.b16 %v1640
  %v2160 = vunpack.c.l.b16 %v1641
  %v2161 = vunpack.c.l.b16 %v1642
  %v2162 = vunpack.c.l.b16 %v1643
  %v2163 = vunpack.c.l.b16 %v1644
  %v2164 = vunpack.c.l.b16 %v1645
  %v2165 = vunpack.c.l.b16 %v1646
  %v2166 = vunpack.c.l.b16 %v1647
  %v2167 = vunpack.c.l.b16 %v1648
  %v2168 = vunpack.c.l.b16 %v1649
  %v2169 = vunpack.c.l.b16 %v1650
  %v2170 = vunpack.c.l.b16 %v1651
  %v2171 = vunpack.c.l.b16 %v1652
  %v2172 = vunpack.c.l.b16 %v1653
  %v2173 = vunpack.c.l.b16 %v1654
  %v2174 = vunpack.c.l.b16 %v1655
  %v2175 = vunpack.c.l.b16 %v1656
  %v2176 = vunpack.c.l.b16 %v1657
  %v2177 = vunpack.c.l.b16 %v1658
  %v2178 = vunpack.c.l.b16 %v1659
  %v2179 = vunpack.c.l.b16 %v1660
  %v2180 = vunpack.c.l.b16 %v1661
  %v2181 = vunpack.c.l.b16 %v1662
  %v2182 = vunpack.c.l.b16 %v1663
  %v2183 = vunpack.c.l.b16 %v1664
  %v2184 = vunpack.c.l.b16 %v1665
  %v2185 = vunpack.c.l.b16 %v1666
  %v2186 = vunpack.c.l.b16 %v1667
  %v2187 = vunpack.c.l.b16 %v1668
  %v2188 = vunpack.c.l.b16 %v1669
  %v2189 = vunpack.c.l.b16 %v1670
  %v2190 = vunpack.c.l.b16 %v1671
  %v2191 = vunpack.c.l.b16 %v1672
  %v2192 = vunpack.c.l.b16 %v1673
  %v2193 = vunpack.c.l.b16 %v1674
  %v2194 = vunpack.c.l.b16 %v1675
  %v2195 = vunpack.c.l.b16 %v1676
  %v2196 = vunpack.c.l.b16 %v1677
  %v2197 = vunpack.c.l.b16 %v1678
  %v2198 = vunpack.c.l.b16 %v1679
  %v2199 = vunpack.c.l.b16 %v1680
  %v2200 = vunpack.c.l.b16 %v1681
  %v2201 = vunpack.c.l.b16 %v1682
  %v2202 = vunpack.c.l.b16 %v1683
  %v2203 = vunpack.c.l.b16 %v1684
  %v2204 = vunpack.c.l.b16 %v1685
  %v2205 = vunpack.c.l.b16 %v1686
  %v2206 = vunpack.c.l.b16 %v1687
  %v2207 = vunpack.c.l.b16 %v1688
  %v2208 = vunpack.c.l.b16 %v1689
  %v2209 = vunpack.c.l.b16 %v1690
  %v2210 = vunpack.c.l.b16 %v1691
  %v2211 = vunpack.c.l.b16 %v1692
  %v2212 = vunpack.c.l.b16 %v1693
  %v2213 = vunpack.c.l.b16 %v1694
  %v2214 = vunpack.c.l.b16 %v1695
  %v2215 = vunpack.c.l.b16 %v1696
  %v2216 = vunpack.c.l.b16 %v1697
  %v2217 = vunpack.c.l.b16 %v1698
  %v2218 = vunpack.c.l.b16 %v1699
  %v2219 = vunpack.c.l.b16 %v1700
  %v2220 = vunpack.c.l.b16 %v1701
  %v2221 = vunpack.c.l.b16 %v1702
  %v2222 = vunpack.c.l.b16 %v1703
  %v2223 = vunpack.c.l.b16 %v1704
  %v2224 = vunpack.c.l.b16 %v1705
  %v2225 = vunpack.c.l.b16 %v1706
  %v2226 = vunpack.c.l.b16 %v1707
  %v2227 = vunpack.c.l.b16 %v1708
  %v2228 = vunpack.c.l.b16 %v1709
  %v2229 = vunpack.c.l.b16 %v1710
  %v2230 = vunpack.c.l.b16 %v1711
  %v2231 = vunpack.c.l.b16 %v1712
  %v2232 = vunpack.c.l.b16 %v1713
  %v2233 = vunpack.c.l.b16 %v1714
  %v2234 = vunpack.c.l.b16 %v1715
  %v2235 = vunpack.c.l.b16 %v1716
  %v2236 = vunpack.c.l.b16 %v1717
  %v2237 = vunpack.c.l.b16 %v1718
  %v2238 = vunpack.c.l.b16 %v1719
  %v2239 = vunpack.c.l.b16 %v1720
  %v2240 = vunpack.c.l.b16 %v1721
  %v2241 = vunpack.c.l.b16 %v1722
  %v2242 = vunpack.c.l.b16 %v1723
  %v2243 = vunpack.c.l.b16 %v1724
  %v2244 = vunpack.c.l.b16 %v1725
  %v2245 = vunpack.c.l.b16 %v1726
  %v2246 = vunpack.c.l.b16 %v1727
  %v2247 = vunpack.c.l.b16 %v1728
  %v2248 = vunpack.c.l.b16 %v1729
  %v2249 = vunpack.c.l.b16 %v1730
  %v2250 = vunpack.c.l.b16 %v1731
  %v2251 = vunpack.c.l.b16 %v1732
  %v2252 = vunpack.c.l.b16 %v1733
  %v2253 = vunpack.c.l.b16 %v1734
  %v2254 = vunpack.c.l.b16 %v1735
  %v2255 = vunpack.c.l.b16 %v1736
  %v2256 = vunpack.c.l.b16 %v1737
  %v2257 = vunpack.c.l.b16 %v1738
  %v2258 = vunpack.c.l.b16 %v1739
  %v2259 = vunpack.c.l.b16 %v1740
  %v2260 = vunpack.c.l.b16 %v1741
  %v2261 = vunpack.c.l.b16 %v1742
  %v2262 = vunpack.c.l.b16 %v1743
  %v2263 = vunpack.c.l.b16 %v1744
  %v2264 = vunpack.c.l.b16 %v1745
  %v2265 = vunpack.c.l.b16 %v1746
  %v2266 = vunpack.c.l.b16 %v1747
  %v2267 = vunpack.c.l.b16 %v1748
  %v2268 = vunpack.c.l.b16 %v1749
  %v2269 = vunpack.c.l.b16 %v1750
  %v2270 = vunpack.c.l.b16 %v1751
  %v2271 = vunpack.c.l.b16 %v1752
  %v2272 = vunpack.c.l.b16 %v1753
  %v2273 = vunpack.c.l.b16 %v1754
  %v2274 = vunpack.c.l.b16 %v1755
  %v2275 = vunpack.c.l.b16 %v1756
  %v2276 = vunpack.c.l.b16 %v1757
  %v2277 = vunpack.c.l.b16 %v1758
  %v2278 = vunpack.c.l.b16 %v1759
  %v2279 = vunpack.c.l.b16 %v1760
  %v2280 = vunpack.c.l.b16 %v1761
  %v2281 = vunpack.c.l.b16 %v1762
  %v2282 = vunpack.c.l.b16 %v1763
  %v2283 = vunpack.c.l.b16 %v1764
  %v2284 = vunpack.c.l.b16 %v1765
  %v2285 = vunpack.c.l.b16 %v1766
  %v2286 = vunpack.c.l.b16 %v1767
  %v2287 = vunpack.c.l.b16 %v1768
  %v2288 = vunpack.c.l.b16 %v1769
  %v2289 = vunpack.c.l.b16 %v1770
  %v2290 = vunpack.c.l.b16 %v1771
  %v2291 = vunpack.c.l.b16 %v1772
  %v2292 = vunpack.c.l.b16 %v1773
  %v2293 = vunpack.c.l.b16 %v1774
  %v2294 = vunpack.c.l.b16 %v1775
  %v2295 = vunpack.c.l.b16 %v1776
  %v2296 = vunpack.c.l.b16 %v1777
  %v2297 = vunpack.c.l.b16 %v1778
  %v2298 = vunpack.c.l.b16 %v1779
  %v2299 = vunpack.c.l.b16 %v1780
  %v2300 = vunpack.c.l.b16 %v1781
  %v2301 = vunpack.c.l.b16 %v1782
  %v2302 = vunpack.c.l.b16 %v1783
  %v2303 = vunpack.c.l.b16 %v1784
  %v2304 = vunpack.c.l.b16 %v1785
  %v2305 = vunpack.c.l.b16 %v1786
  %v2306 = vunpack.c.l.b16 %v1787
  %v2307 = vunpack.c.l.b16 %v1788
  %v2308 = vunpack.c.l.b16 %v1789
  %v2309 = vunpack.c.l.b16 %v1790
  %v2310 = vunpack.c.l.b16 %v1791
  %v2311 = vunpack.c.l.b16 %v1792
  %v2312 = vunpack.c.l.b16 %v1793
  %v2313 = vunpack.c.l.b16 %v1794
  %v2314 = vunpack.c.l.b16 %v1795
  %v2315 = vunpack.c.l.b16 %v1796
  %v2316 = vunpack.c.l.b16 %v1797
  %v2317 = vpack.c.b16 %v2062, %v2061
  %v2318 = vpack.c.b16 %v2064, %v2063
  %v2319 = vpack.c.b16 %v2066, %v2065
  %v2320 = vpack.c.b16 %v2068, %v2067
  %v2321 = vpack.c.b16 %v2070, %v2069
  %v2322 = vpack.c.b16 %v2072, %v2071
  %v2323 = vpack.c.b16 %v2074, %v2073
  %v2324 = vpack.c.b16 %v2076, %v2075
  %v2325 = vpack.c.b16 %v2078, %v2077
  %v2326 = vpack.c.b16 %v2080, %v2079
  %v2327 = vpack.c.b16 %v2082, %v2081
  %v2328 = vpack.c.b16 %v2084, %v2083
  %v2329 = vpack.c.b16 %v2086, %v2085
  %v2330 = vpack.c.b16 %v2088, %v2087
  %v2331 = vpack.c.b16 %v2090, %v2089
  %v2332 = vpack.c.b16 %v2092, %v2091
  %v2333 = vpack.c.b16 %v2094, %v2093
  %v2334 = vpack.c.b16 %v2096, %v2095
  %v2335 = vpack.c.b16 %v2098, %v2097
  %v2336 = vpack.c.b16 %v2100, %v2099
  %v2337 = vpack.c.b16 %v2102, %v2101
  %v2338 = vpack.c.b16 %v2104, %v2103
  %v2339 = vpack.c.b16 %v2106, %v2105
  %v2340 = vpack.c.b16 %v2108, %v2107
  %v2341 = vpack.c.b16 %v2110, %v2109
  %v2342 = vpack.c.b16 %v2112, %v2111
  %v2343 = vpack.c.b16 %v2114, %v2113
  %v2344 = vpack.c.b16 %v2116, %v2115
  %v2345 = vpack.c.b16 %v2118, %v2117
  %v2346 = vpack.c.b16 %v2120, %v2119
  %v2347 = vpack.c.b16 %v2122, %v2121
  %v2348 = vpack.c.b16 %v2124, %v2123
  %v2349 = vpack.c.b16 %v2126, %v2125
  %v2350 = vpack.c.b16 %v2128, %v2127
  %v2351 = vpack.c.b16 %v2130, %v2129
  %v2352 = vpack.c.b16 %v2132, %v2131
  %v2353 = vpack.c.b16 %v2134, %v2133
  %v2354 = vpack.c.b16 %v2136, %v2135
  %v2355 = vpack.c.b16 %v2138, %v2137
  %v2356 = vpack.c.b16 %v2140, %v2139
  %v2357 = vpack.c.b16 %v2142, %v2141
  %v2358 = vpack.c.b16 %v2144, %v2143
  %v2359 = vpack.c.b16 %v2146, %v2145
  %v2360 = vpack.c.b16 %v2148, %v2147
  %v2361 = vpack.c.b16 %v2150, %v2149
  %v2362 = vpack.c.b16 %v2152, %v2151
  %v2363 = vpack.c.b16 %v2154, %v2153
  %v2364 = vpack.c.b16 %v2156, %v2155
  %v2365 = vpack.c.b16 %v2158, %v2157
  %v2366 = vpack.c.b16 %v2160, %v2159
  %v2367 = vpack.c.b16 %v2162, %v2161
  %v2368 = vpack.c.b16 %v2164, %v2163
  %v2369 = vpack.c.b16 %v2166, %v2165
  %v2370 = vpack.c.b16 %v2168, %v2167
  %v2371 = vpack.c.b16 %v2170, %v2169
  %v2372 = vpack.c.b16 %v2172, %v2171
  %v2373 = vpack.c.b16 %v2174, %v2173
  %v2374 = vpack.c.b16 %v2176, %v2175
  %v2375 = vpack.c.b16 %v2178, %v2177
  %v2376 = vpack.c.b16 %v2180, %v2179
  %v2377 = vpack.c.b16 %v2182, %v2181
  %v2378 = vpack.c.b16 %v2184, %v2183
  %v2379 = vpack.c.b16 %v2186, %v2185
  %v2380 = vpack.c.b16 %v2188, %v2187
  %v2381 = vpack.c.b16 %v2190, %v2189
  %v2382 = vpack.c.b16 %v2192, %v2191
  %v2383 = vpack.c.b16 %v2194, %v2193
  %v2384 = vpack.c.b16 %v2196, %v2195
  %v2385 = vpack.c.b16 %v2198, %v2197
  %v2386 = vpack.c.b16 %v2200, %v2199
  %v2387 = vpack.c.b16 %v2202, %v2201
  %v2388 = vpack.c.b16 %v2204, %v2203
  %v2389 = vpack.c.b16 %v2206, %v2205
  %v2390 = vpack.c.b16 %v2208, %v2207
  %v2391 = vpack.c.b16 %v2210, %v2209
  %v2392 = vpack.c.b16 %v2212, %v2211
  %v2393 = vpack.c.b16 %v2214, %v2213
  %v2394 = vpack.c.b16 %v2216, %v2215
  %v2395 = vpack.c.b16 %v2218, %v2217
  %v2396 = vpack.c.b16 %v2220, %v2219
  %v2397 = vpack.c.b16 %v2222, %v2221
  %v2398 = vpack.c.b16 %v2224, %v2223
  %v2399 = vpack.c.b16 %v2226, %v2225
  %v2400 = vpack.c.b16 %v2228, %v2227
  %v2401 = vpack.c.b16 %v2230, %v2229
  %v2402 = vpack.c.b16 %v2232, %v2231
  %v2403 = vpack.c.b16 %v2234, %v2233
  %v2404 = vpack.c.b16 %v2236, %v2235
  %v2405 = vpack.c.b16 %v2238, %v2237
  %v2406 = vpack.c.b16 %v2240, %v2239
  %v2407 = vpack.c.b16 %v2242, %v2241
  %v2408 = vpack.c.b16 %v2244, %v2243
  %v2409 = vpack.c.b16 %v2246, %v2245
  %v2410 = vpack.c.b16 %v2248, %v2247
  %v2411 = vpack.c.b16 %v2250, %v2249
  %v2412 = vpack.c.b16 %v2252, %v2251
  %v2413 = vpack.c.b16 %v2254, %v2253
  %v2414 = vpack.c.b16 %v2256, %v2255
  %v2415 = vpack.c.b16 %v2258, %v2257
  %v2416 = vpack.c.b16 %v2260, %v2259
  %v2417 = vpack.c.b16 %v2262, %v2261
  %v2418 = vpack.c.b16 %v2264, %v2263
  %v2419 = vpack.c.b16 %v2266, %v2265
  %v2420 = vpack.c.b16 %v2268, %v2267
  %v2421 = vpack.c.b16 %v2270, %v2269
  %v2422 = vpack.c.b16 %v2272, %v2271
  %v2423 = vpack.c.b16 %v2274, %v2273
  %v2424 = vpack.c.b16 %v2276, %v2275
  %v2425 = vpack.c.b16 %v2278, %v2277
  %v2426 = vpack.c.b16 %v2280, %v2279
  %v2427 = vpack.c.b16 %v2282, %v2281
  %v2428 = vpack.c.b16 %v2284, %v2283
  %v2429 = vpack.c.b16 %v2286, %v2285
  %v2430 = vpack.c.b16 %v2288, %v2287
  %v2431 = vpack.c.b16 %v2290, %v2289
  %v2432 = vpack.c.b16 %v2292, %v2291
  %v2433 = vpack.c.b16 %v2294, %v2293
  %v2434 = vpack.c.b16 %v2296, %v2295
  %v2435 = vpack.c.b16 %v2298, %v2297
  %v2436 = vpack.c.b16 %v2300, %v2299
  %v2437 = vpack.c.b16 %v2302, %v2301
  %v2438 = vpack.c.b16 %v2304, %v2303
  %v2439 = vpack.c.b16 %v2306, %v2305
  %v2440 = vpack.c.b16 %v2308, %v2307
  %v2441 = vpack.c.b16 %v2310, %v2309
  %v2442 = vpack.c.b16 %v2312, %v2311
  %v2443 = vpack.c.b16 %v2314, %v2313
  %v2444 = vpack.c.b16 %v2316, %v2315
  %2573 = vmatprep.subr.bf16.mxu0 0
  %2574 = vmatpush1.bf16.msra.mxu0 %v2317
  %2575 = vmatprep.subr.bf16.mxu0 0
  %2576 = vmatpush1.bf16.msra.mxu0 %v2318
  %2577 = vmatprep.subr.bf16.mxu0 0
  %2578 = vmatpush1.bf16.msra.mxu0 %v2319
  %2579 = vmatprep.subr.bf16.mxu0 0
  %2580 = vmatpush1.bf16.msra.mxu0 %v2320
  %2581 = vmatprep.subr.bf16.mxu0 0
  %2582 = vmatpush1.bf16.msra.mxu0 %v2321
  %2583 = vmatprep.subr.bf16.mxu0 0
  %2584 = vmatpush1.bf16.msra.mxu0 %v2322
  %2585 = vmatprep.subr.bf16.mxu0 0
  %2586 = vmatpush1.bf16.msra.mxu0 %v2323
  %2587 = vmatprep.subr.bf16.mxu0 0
  %2588 = vmatpush1.bf16.msra.mxu0 %v2324
  %2589 = vmatprep.subr.bf16.mxu0 0
  %2590 = vmatpush1.bf16.msra.mxu0 %v2325
  %2591 = vmatprep.subr.bf16.mxu0 0
  %2592 = vmatpush1.bf16.msra.mxu0 %v2326
  %2593 = vmatprep.subr.bf16.mxu0 0
  %2594 = vmatpush1.bf16.msra.mxu0 %v2327
  %2595 = vmatprep.subr.bf16.mxu0 0
  %2596 = vmatpush1.bf16.msra.mxu0 %v2328
  %2597 = vmatprep.subr.bf16.mxu0 0
  %2598 = vmatpush1.bf16.msra.mxu0 %v2329
  %2599 = vmatprep.subr.bf16.mxu0 0
  %2600 = vmatpush1.bf16.msra.mxu0 %v2330
  %2601 = vmatprep.subr.bf16.mxu0 0
  %2602 = vmatpush1.bf16.msra.mxu0 %v2331
  %2603 = vmatprep.subr.bf16.mxu0 0
  %2604 = vmatpush1.bf16.msra.mxu0 %v2332
  %2605 = vmatprep.mubr.bf16.mxu0 %v1527
  %2606 = vmatmul.mubr.bf16.gmra.mrb[0].mxu0 %v1526
  %v2607 = vpop.f32.mrb[0].mxu0
  %v2608 = vadd.f32 %v1803, %v2607
  %v2609 = vpop.f32.mrb[0].mxu0
  %v2610 = vpop.f32.mrb[0].mxu0
  %v2611 = vadd.f32 %v1803, %v2610
  %v2612 = vpop.f32.mrb[0].mxu0
  %2613 = vdwg.mxu0
  %2614 = vmatprep.subr.bf16.mxu0 0
  %2615 = vmatpush1.bf16.msra.mxu0 %v2333
  %2616 = vmatprep.subr.bf16.mxu0 0
  %2617 = vmatpush1.bf16.msra.mxu0 %v2334
  %2618 = vmatprep.subr.bf16.mxu0 0
  %2619 = vmatpush1.bf16.msra.mxu0 %v2335
  %2620 = vmatprep.subr.bf16.mxu0 0
  %2621 = vmatpush1.bf16.msra.mxu0 %v2336
  %2622 = vmatprep.subr.bf16.mxu0 0
  %2623 = vmatpush1.bf16.msra.mxu0 %v2337
  %2624 = vmatprep.subr.bf16.mxu0 0
  %2625 = vmatpush1.bf16.msra.mxu0 %v2338
  %2626 = vmatprep.subr.bf16.mxu0 0
  %2627 = vmatpush1.bf16.msra.mxu0 %v2339
  %2628 = vmatprep.subr.bf16.mxu0 0
  %2629 = vmatpush1.bf16.msra.mxu0 %v2340
  %2630 = vmatprep.subr.bf16.mxu0 0
  %2631 = vmatpush1.bf16.msra.mxu0 %v2341
  %2632 = vmatprep.subr.bf16.mxu0 0
  %2633 = vmatpush1.bf16.msra.mxu0 %v2342
  %2634 = vmatprep.subr.bf16.mxu0 0
  %2635 = vmatpush1.bf16.msra.mxu0 %v2343
  %2636 = vmatprep.subr.bf16.mxu0 0
  %2637 = vmatpush1.bf16.msra.mxu0 %v2344
  %2638 = vmatprep.subr.bf16.mxu0 0
  %2639 = vmatpush1.bf16.msra.mxu0 %v2345
  %2640 = vmatprep.subr.bf16.mxu0 0
  %2641 = vmatpush1.bf16.msra.mxu0 %v2346
  %2642 = vmatprep.subr.bf16.mxu0 0
  %2643 = vmatpush1.bf16.msra.mxu0 %v2347
  %2644 = vmatprep.subr.bf16.mxu0 0
  %2645 = vmatpush1.bf16.msra.mxu0 %v2348
  %2646 = vmatprep.mubr.bf16.mxu0 %v1529
  %2647 = vmatmul.mubr.bf16.gmra.mrb[0].mxu0 %v1528
  %v2648 = vpop.f32.mrb[0].mxu0
  %v2649 = vadd.f32 %v2608, %v2648
  %v2650 = vpop.f32.mrb[0].mxu0
  %v2651 = vpop.f32.mrb[0].mxu0
  %v2652 = vadd.f32 %v2611, %v2651
  %v2653 = vpop.f32.mrb[0].mxu0
  %2654 = vdwg.mxu0
  %2655 = vmatprep.subr.bf16.mxu0 0
  %2656 = vmatpush1.bf16.msra.mxu0 %v2349
  %2657 = vmatprep.subr.bf16.mxu0 0
  %2658 = vmatpush1.bf16.msra.mxu0 %v2350
  %2659 = vmatprep.subr.bf16.mxu0 0
  %2660 = vmatpush1.bf16.msra.mxu0 %v2351
  %2661 = vmatprep.subr.bf16.mxu0 0
  %2662 = vmatpush1.bf16.msra.mxu0 %v2352
  %2663 = vmatprep.subr.bf16.mxu0 0
  %2664 = vmatpush1.bf16.msra.mxu0 %v2353
  %2665 = vmatprep.subr.bf16.mxu0 0
  %2666 = vmatpush1.bf16.msra.mxu0 %v2354
  %2667 = vmatprep.subr.bf16.mxu0 0
  %2668 = vmatpush1.bf16.msra.mxu0 %v2355
  %2669 = vmatprep.subr.bf16.mxu0 0
  %2670 = vmatpush1.bf16.msra.mxu0 %v2356
  %2671 = vmatprep.subr.bf16.mxu0 0
  %2672 = vmatpush1.bf16.msra.mxu0 %v2357
  %2673 = vmatprep.subr.bf16.mxu0 0
  %2674 = vmatpush1.bf16.msra.mxu0 %v2358
  %2675 = vmatprep.subr.bf16.mxu0 0
  %2676 = vmatpush1.bf16.msra.mxu0 %v2359
  %2677 = vmatprep.subr.bf16.mxu0 0
  %2678 = vmatpush1.bf16.msra.mxu0 %v2360
  %2679 = vmatprep.subr.bf16.mxu0 0
  %2680 = vmatpush1.bf16.msra.mxu0 %v2361
  %2681 = vmatprep.subr.bf16.mxu0 0
  %2682 = vmatpush1.bf16.msra.mxu0 %v2362
  %2683 = vmatprep.subr.bf16.mxu0 0
  %2684 = vmatpush1.bf16.msra.mxu0 %v2363
  %2685 = vmatprep.subr.bf16.mxu0 0
  %2686 = vmatpush1.bf16.msra.mxu0 %v2364
  %2687 = vmatprep.mubr.bf16.mxu0 %v1531
  %2688 = vmatmul.mubr.bf16.gmra.mrb[0].mxu0 %v1530
  %v2689 = vpop.f32.mrb[0].mxu0
  %v2690 = vadd.f32 %v2649, %v2689
  %v2691 = vpop.f32.mrb[0].mxu0
  %v2692 = vpop.f32.mrb[0].mxu0
  %v2693 = vadd.f32 %v2652, %v2692
  %v2694 = vpop.f32.mrb[0].mxu0
  %2695 = vdwg.mxu0
  %2696 = vmatprep.subr.bf16.mxu0 0
  %2697 = vmatpush1.bf16.msra.mxu0 %v2365
  %2698 = vmatprep.subr.bf16.mxu0 0
  %2699 = vmatpush1.bf16.msra.mxu0 %v2366
  %2700 = vmatprep.subr.bf16.mxu0 0
  %2701 = vmatpush1.bf16.msra.mxu0 %v2367
  %2702 = vmatprep.subr.bf16.mxu0 0
  %2703 = vmatpush1.bf16.msra.mxu0 %v2368
  %2704 = vmatprep.subr.bf16.mxu0 0
  %2705 = vmatpush1.bf16.msra.mxu0 %v2369
  %2706 = vmatprep.subr.bf16.mxu0 0
  %2707 = vmatpush1.bf16.msra.mxu0 %v2370
  %2708 = vmatprep.subr.bf16.mxu0 0
  %2709 = vmatpush1.bf16.msra.mxu0 %v2371
  %2710 = vmatprep.subr.bf16.mxu0 0
  %2711 = vmatpush1.bf16.msra.mxu0 %v2372
  %2712 = vmatprep.subr.bf16.mxu0 0
  %2713 = vmatpush1.bf16.msra.mxu0 %v2373
  %2714 = vmatprep.subr.bf16.mxu0 0
  %2715 = vmatpush1.bf16.msra.mxu0 %v2374
  %2716 = vmatprep.subr.bf16.mxu0 0
  %2717 = vmatpush1.bf16.msra.mxu0 %v2375
  %2718 = vmatprep.subr.bf16.mxu0 0
  %2719 = vmatpush1.bf16.msra.mxu0 %v2376
  %2720 = vmatprep.subr.bf16.mxu0 0
  %2721 = vmatpush1.bf16.msra.mxu0 %v2377
  %2722 = vmatprep.subr.bf16.mxu0 0
  %2723 = vmatpush1.bf16.msra.mxu0 %v2378
  %2724 = vmatprep.subr.bf16.mxu0 0
  %2725 = vmatpush1.bf16.msra.mxu0 %v2379
  %2726 = vmatprep.subr.bf16.mxu0 0
  %2727 = vmatpush1.bf16.msra.mxu0 %v2380
  %2728 = vmatprep.mubr.bf16.mxu0 %v1533
  %2729 = vmatmul.mubr.bf16.gmra.mrb[0].mxu0 %v1532
  %v2730 = vpop.f32.mrb[0].mxu0
  %v2731 = vadd.f32 %v2690, %v2730
  %v2732 = vpop.f32.mrb[0].mxu0
  %v2733 = vpop.f32.mrb[0].mxu0
  %v2734 = vadd.f32 %v2693, %v2733
  %v2735 = vpop.f32.mrb[0].mxu0
  %2736 = vdwg.mxu0
  %2737 = vmatprep.subr.bf16.mxu0 0
  %2738 = vmatpush1.bf16.msra.mxu0 %v2381
  %2739 = vmatprep.subr.bf16.mxu0 0
  %2740 = vmatpush1.bf16.msra.mxu0 %v2382
  %2741 = vmatprep.subr.bf16.mxu0 0
  %2742 = vmatpush1.bf16.msra.mxu0 %v2383
  %2743 = vmatprep.subr.bf16.mxu0 0
  %2744 = vmatpush1.bf16.msra.mxu0 %v2384
  %2745 = vmatprep.subr.bf16.mxu0 0
  %2746 = vmatpush1.bf16.msra.mxu0 %v2385
  %2747 = vmatprep.subr.bf16.mxu0 0
  %2748 = vmatpush1.bf16.msra.mxu0 %v2386
  %2749 = vmatprep.subr.bf16.mxu0 0
  %2750 = vmatpush1.bf16.msra.mxu0 %v2387
  %2751 = vmatprep.subr.bf16.mxu0 0
  %2752 = vmatpush1.bf16.msra.mxu0 %v2388
  %2753 = vmatprep.subr.bf16.mxu0 0
  %2754 = vmatpush1.bf16.msra.mxu0 %v2389
  %2755 = vmatprep.subr.bf16.mxu0 0
  %2756 = vmatpush1.bf16.msra.mxu0 %v2390
  %2757 = vmatprep.subr.bf16.mxu0 0
  %2758 = vmatpush1.bf16.msra.mxu0 %v2391
  %2759 = vmatprep.subr.bf16.mxu0 0
  %2760 = vmatpush1.bf16.msra.mxu0 %v2392
  %2761 = vmatprep.subr.bf16.mxu0 0
  %2762 = vmatpush1.bf16.msra.mxu0 %v2393
  %2763 = vmatprep.subr.bf16.mxu0 0
  %2764 = vmatpush1.bf16.msra.mxu0 %v2394
  %2765 = vmatprep.subr.bf16.mxu0 0
  %2766 = vmatpush1.bf16.msra.mxu0 %v2395
  %2767 = vmatprep.subr.bf16.mxu0 0
  %2768 = vmatpush1.bf16.msra.mxu0 %v2396
  %2769 = vmatprep.mubr.bf16.mxu0 %v1535
  %2770 = vmatmul.mubr.bf16.gmra.mrb[0].mxu0 %v1534
  %v2771 = vpop.f32.mrb[0].mxu0
  %v2772 = vadd.f32 %v2731, %v2771
  %v2773 = vpop.f32.mrb[0].mxu0
  %v2774 = vpop.f32.mrb[0].mxu0
  %v2775 = vadd.f32 %v2734, %v2774
  %v2776 = vpop.f32.mrb[0].mxu0
  %2777 = vdwg.mxu0
  %2778 = vmatprep.subr.bf16.mxu0 0
  %2779 = vmatpush1.bf16.msra.mxu0 %v2397
  %2780 = vmatprep.subr.bf16.mxu0 0
  %2781 = vmatpush1.bf16.msra.mxu0 %v2398
  %2782 = vmatprep.subr.bf16.mxu0 0
  %2783 = vmatpush1.bf16.msra.mxu0 %v2399
  %2784 = vmatprep.subr.bf16.mxu0 0
  %2785 = vmatpush1.bf16.msra.mxu0 %v2400
  %2786 = vmatprep.subr.bf16.mxu0 0
  %2787 = vmatpush1.bf16.msra.mxu0 %v2401
  %2788 = vmatprep.subr.bf16.mxu0 0
  %2789 = vmatpush1.bf16.msra.mxu0 %v2402
  %2790 = vmatprep.subr.bf16.mxu0 0
  %2791 = vmatpush1.bf16.msra.mxu0 %v2403
  %2792 = vmatprep.subr.bf16.mxu0 0
  %2793 = vmatpush1.bf16.msra.mxu0 %v2404
  %2794 = vmatprep.subr.bf16.mxu0 0
  %2795 = vmatpush1.bf16.msra.mxu0 %v2405
  %2796 = vmatprep.subr.bf16.mxu0 0
  %2797 = vmatpush1.bf16.msra.mxu0 %v2406
  %2798 = vmatprep.subr.bf16.mxu0 0
  %2799 = vmatpush1.bf16.msra.mxu0 %v2407
  %2800 = vmatprep.subr.bf16.mxu0 0
  %2801 = vmatpush1.bf16.msra.mxu0 %v2408
  %2802 = vmatprep.subr.bf16.mxu0 0
  %2803 = vmatpush1.bf16.msra.mxu0 %v2409
  %2804 = vmatprep.subr.bf16.mxu0 0
  %2805 = vmatpush1.bf16.msra.mxu0 %v2410
  %2806 = vmatprep.subr.bf16.mxu0 0
  %2807 = vmatpush1.bf16.msra.mxu0 %v2411
  %2808 = vmatprep.subr.bf16.mxu0 0
  %2809 = vmatpush1.bf16.msra.mxu0 %v2412
  %2810 = vmatprep.mubr.bf16.mxu0 %v1537
  %2811 = vmatmul.mubr.bf16.gmra.mrb[0].mxu0 %v1536
  %v2812 = vpop.f32.mrb[0].mxu0
  %v2813 = vadd.f32 %v2772, %v2812
  %v2814 = vpop.f32.mrb[0].mxu0
  %v2815 = vpop.f32.mrb[0].mxu0
  %v2816 = vadd.f32 %v2775, %v2815
  %v2817 = vpop.f32.mrb[0].mxu0
  %2818 = vdwg.mxu0
  %2819 = vmatprep.subr.bf16.mxu0 0
  %2820 = vmatpush1.bf16.msra.mxu0 %v2413
  %2821 = vmatprep.subr.bf16.mxu0 0
  %2822 = vmatpush1.bf16.msra.mxu0 %v2414
  %2823 = vmatprep.subr.bf16.mxu0 0
  %2824 = vmatpush1.bf16.msra.mxu0 %v2415
  %2825 = vmatprep.subr.bf16.mxu0 0
  %2826 = vmatpush1.bf16.msra.mxu0 %v2416
  %2827 = vmatprep.subr.bf16.mxu0 0
  %2828 = vmatpush1.bf16.msra.mxu0 %v2417
  %2829 = vmatprep.subr.bf16.mxu0 0
  %2830 = vmatpush1.bf16.msra.mxu0 %v2418
  %2831 = vmatprep.subr.bf16.mxu0 0
  %2832 = vmatpush1.bf16.msra.mxu0 %v2419
  %2833 = vmatprep.subr.bf16.mxu0 0
  %2834 = vmatpush1.bf16.msra.mxu0 %v2420
  %2835 = vmatprep.subr.bf16.mxu0 0
  %2836 = vmatpush1.bf16.msra.mxu0 %v2421
  %2837 = vmatprep.subr.bf16.mxu0 0
  %2838 = vmatpush1.bf16.msra.mxu0 %v2422
  %2839 = vmatprep.subr.bf16.mxu0 0
  %2840 = vmatpush1.bf16.msra.mxu0 %v2423
  %2841 = vmatprep.subr.bf16.mxu0 0
  %2842 = vmatpush1.bf16.msra.mxu0 %v2424
  %2843 = vmatprep.subr.bf16.mxu0 0
  %2844 = vmatpush1.bf16.msra.mxu0 %v2425
  %2845 = vmatprep.subr.bf16.mxu0 0
  %2846 = vmatpush1.bf16.msra.mxu0 %v2426
  %2847 = vmatprep.subr.bf16.mxu0 0
  %2848 = vmatpush1.bf16.msra.mxu0 %v2427
  %2849 = vmatprep.subr.bf16.mxu0 0
  %2850 = vmatpush1.bf16.msra.mxu0 %v2428
  %2851 = vmatprep.mubr.bf16.mxu0 %v1539
  %2852 = vmatmul.mubr.bf16.gmra.mrb[0].mxu0 %v1538
  %v2853 = vpop.f32.mrb[0].mxu0
  %v2854 = vadd.f32 %v2813, %v2853
  %v2855 = vpop.f32.mrb[0].mxu0
  %v2856 = vpop.f32.mrb[0].mxu0
  %v2857 = vadd.f32 %v2816, %v2856
  %v2858 = vpop.f32.mrb[0].mxu0
  %2859 = vdwg.mxu0
  %2860 = vmatprep.subr.bf16.mxu0 0
  %2861 = vmatpush1.bf16.msra.mxu0 %v2429
  %2862 = vmatprep.subr.bf16.mxu0 0
  %2863 = vmatpush1.bf16.msra.mxu0 %v2430
  %2864 = vmatprep.subr.bf16.mxu0 0
  %2865 = vmatpush1.bf16.msra.mxu0 %v2431
  %2866 = vmatprep.subr.bf16.mxu0 0
  %2867 = vmatpush1.bf16.msra.mxu0 %v2432
  %2868 = vmatprep.subr.bf16.mxu0 0
  %2869 = vmatpush1.bf16.msra.mxu0 %v2433
  %2870 = vmatprep.subr.bf16.mxu0 0
  %2871 = vmatpush1.bf16.msra.mxu0 %v2434
  %2872 = vmatprep.subr.bf16.mxu0 0
  %2873 = vmatpush1.bf16.msra.mxu0 %v2435
  %2874 = vmatprep.subr.bf16.mxu0 0
  %2875 = vmatpush1.bf16.msra.mxu0 %v2436
  %2876 = vmatprep.subr.bf16.mxu0 0
  %2877 = vmatpush1.bf16.msra.mxu0 %v2437
  %2878 = vmatprep.subr.bf16.mxu0 0
  %2879 = vmatpush1.bf16.msra.mxu0 %v2438
  %2880 = vmatprep.subr.bf16.mxu0 0
  %2881 = vmatpush1.bf16.msra.mxu0 %v2439
  %2882 = vmatprep.subr.bf16.mxu0 0
  %2883 = vmatpush1.bf16.msra.mxu0 %v2440
  %2884 = vmatprep.subr.bf16.mxu0 0
  %2885 = vmatpush1.bf16.msra.mxu0 %v2441
  %2886 = vmatprep.subr.bf16.mxu0 0
  %2887 = vmatpush1.bf16.msra.mxu0 %v2442
  %2888 = vmatprep.subr.bf16.mxu0 0
  %2889 = vmatpush1.bf16.msra.mxu0 %v2443
  %2890 = vmatprep.subr.bf16.mxu0 0
  %2891 = vmatpush1.bf16.msra.mxu0 %v2444
  %2892 = vmatprep.mubr.bf16.mxu0 %v1541
  %2893 = vmatmul.mubr.bf16.gmra.mrb[0].mxu0 %v1540
  %v2894 = vpop.f32.mrb[0].mxu0
  %v2895 = vadd.f32 %v2854, %v2894
  %v2896 = vpop.f32.mrb[0].mxu0
  %v2897 = vpop.f32.mrb[0].mxu0
  %v2898 = vadd.f32 %v2857, %v2897
  %v2899 = vpop.f32.mrb[0].mxu0
  %2900 = vdwg.mxu0
  %v2901 = vadd.f32 %v676, %v2895
  %v2902 = vadd.f32 %v677, %v2898
  %v2903 = vld [vmem:[%s16] sm:$0x1]
  %v2904 = vld [vmem:[%s17] sm:$0x1]
  %v2905 = vsel %vm197, %v2901, 0.0
  %2906 = vadd.xlane.f32.xlu0 %v2905
  %v2907 = vpop.xlane.xlu0 %2906
  %v2908 = vsel %vm197, %v2902, 0.0
  %2909 = vadd.xlane.f32.xlu0 %v2908
  %v2910 = vpop.xlane.xlu0 %2909
  %v2911 = vmul.f32 %v2907, %v641
  %v2912 = vmul.f32 %v2910, %v641
  %v2913 = vsub.f32 %v2901, %v2911
  %v2914 = vsub.f32 %v2902, %v2912
  %v2915 = vmul.f32 %v2913, %v2913
  %v2916 = vmul.f32 %v2914, %v2914
  %v2917 = vsel %vm197, %v2915, 0.0
  %2918 = vadd.xlane.f32.xlu0 %v2917
  %v2919 = vpop.xlane.xlu0 %2918
  %v2920 = vsel %vm197, %v2916, 0.0
  %2921 = vadd.xlane.f32.xlu0 %v2920
  %v2922 = vpop.xlane.xlu0 %2921
  %v2923 = vmul.f32 %v2919, %v641
  %v2924 = vmul.f32 %v2922, %v641
  %v2925 = vadd.f32 %v2923, 1e-05
  %v2926 = vadd.f32 %v2924, 1e-05
  %v2927 = vrsqrt.pop %v2925
  %v2928 = vrsqrt.pop %v2926
  %v2929 = vmul.f32 %v2913, %v2927
  %v2930 = vmul.f32 %v2914, %v2928
  %v2932 = vlaneseq
  %v2933 = vshrl.u32 %v2932, 7
  %v2934 = vsub.s32 0, %v2933
  %v2935 = vrot.slane %v2903, %v2934
  %v2937 = vmul.f32 %v2929, %v2935
  %v2938 = vmul.f32 %v2930, %v2935
  %v2940 = vlaneseq
  %v2941 = vshrl.u32 %v2940, 7
  %v2942 = vsub.s32 0, %v2941
  %v2943 = vrot.slane %v2904, %v2942
  %v2945 = vadd.f32 %v2937, %v2943
  %v2946 = vadd.f32 %v2938, %v2943
  %v2948 = vrot.slane %v2945, 7
  %v2951 = vrot.slane %v2946, 6
  %v2953 = vsel %vm86, %v2948, %v2951
  %v2954 = vld [vmem:[%s18] sm:$0xff]
  %v2955 = vld [vmem:[%s18 + $0x8] sm:$0xff]
  %v2956 = vld [vmem:[%s18 + $0x10] sm:$0xff]
  %v2957 = vld [vmem:[%s18 + $0x18] sm:$0xff]
  %v2958 = vld [vmem:[%s18 + $0x20] sm:$0xff]
  %v2959 = vld [vmem:[%s18 + $0x28] sm:$0xff]
  %v2960 = vld [vmem:[%s18 + $0x30] sm:$0xff]
  %v2961 = vld [vmem:[%s18 + $0x38] sm:$0xff]
  %v2962 = vld [vmem:[#allocation2] sm:$0x1]
  %v2964 = vlaneseq
  %v2965 = vshrl.u32 %v2964, 7
  %v2966 = vsub.s32 0, %v2965
  %v2967 = vrot.slane %v2962, %v2966
  %v2970 = vsel %vm197, %v2953, 0
  %2972 = vmatprep.subr.mxu0 0.0
  %2973 = vmatpush1.msra.mxu0 %v2954
  %2974 = vmatprep.subr.mxu0 0.0
  %2975 = vmatpush1.msra.mxu0 %v2955
  %2976 = vmatprep.subr.mxu0 0.0
  %2977 = vmatpush1.msra.mxu0 %v2956
  %2978 = vmatprep.subr.mxu0 0.0
  %2979 = vmatpush1.msra.mxu0 %v2957
  %2980 = vmatprep.subr.mxu0 0.0
  %2981 = vmatpush1.msra.mxu0 %v2958
  %2982 = vmatprep.subr.mxu0 0.0
  %2983 = vmatpush1.msra.mxu0 %v2959
  %2984 = vmatprep.subr.mxu0 0.0
  %2985 = vmatpush1.msra.mxu0 %v2960
  %2986 = vmatprep.subr.mxu0 0.0
  %2987 = vmatpush1.msra.mxu0 %v2961
  %2988 = vmatprep.subr.mxu0 0.0
  %2989 = vmatpush1.msra.mxu0 0.0
  %2990 = vmatprep.subr.mxu0 0.0
  %2991 = vmatpush1.msra.mxu0 0.0
  %2992 = vmatprep.subr.mxu0 0.0
  %2993 = vmatpush1.msra.mxu0 0.0
  %2994 = vmatprep.subr.mxu0 0.0
  %2995 = vmatpush1.msra.mxu0 0.0
  %2996 = vmatprep.subr.mxu0 0.0
  %2997 = vmatpush1.msra.mxu0 0.0
  %2998 = vmatprep.subr.mxu0 0.0
  %2999 = vmatpush1.msra.mxu0 0.0
  %3000 = vmatprep.subr.mxu0 0.0
  %3001 = vmatpush1.msra.mxu0 0.0
  %3002 = vmatprep.subr.mxu0 0.0
  %3003 = vmatpush1.msra.mxu0 0.0
  %3004 = vmatprep.subr.mxu0 0.0
  %3005 = vmatpush1.msra.mxu0 0.0
  %3006 = vmatprep.subr.mxu0 0.0
  %3007 = vmatpush1.msra.mxu0 0.0
  %3008 = vmatprep.subr.mxu0 0.0
  %3009 = vmatpush1.msra.mxu0 0.0
  %3010 = vmatprep.subr.mxu0 0.0
  %3011 = vmatpush1.msra.mxu0 0.0
  %3012 = vmatprep.subr.mxu0 0.0
  %3013 = vmatpush1.msra.mxu0 0.0
  %3014 = vmatprep.subr.mxu0 0.0
  %3015 = vmatpush1.msra.mxu0 0.0
  %3016 = vmatprep.subr.mxu0 0.0
  %3017 = vmatpush1.msra.mxu0 0.0
  %3018 = vmatprep.subr.mxu0 0.0
  %3019 = vmatpush1.msra.mxu0 0.0
  %3020 = vmatprep.subr.mxu0 0.0
  %3021 = vmatpush1.msra.mxu0 0.0
  %3022 = vmatprep.subr.mxu0 0.0
  %3023 = vmatpush1.msra.mxu0 0.0
  %3024 = vmatprep.subr.mxu0 0.0
  %3025 = vmatpush1.msra.mxu0 0.0
  %3026 = vmatprep.subr.mxu0 0.0
  %3027 = vmatpush1.msra.mxu0 0.0
  %3028 = vmatprep.subr.mxu0 0.0
  %3029 = vmatpush1.msra.mxu0 0.0
  %3030 = vmatprep.subr.mxu0 0.0
  %3031 = vmatpush1.msra.mxu0 0.0
  %3032 = vmatprep.subr.mxu0 0.0
  %3033 = vmatpush1.msra.mxu0 0.0
  %3034 = vmatprep.subr.mxu0 0.0
  %3035 = vmatpush1.msra.mxu0 0.0
  %3036 = vmatprep.mubr.f32.mxu0 0.0
  %3037 = vmatmul.mubr.f32.gmra.mrb[0].mxu0 %v2970
  %v3038 = vpop.f32.mrb[0].mxu0
  %v3039 = vadd.f32 %v2967, %v3038
  %v3040 = vpop.f32.mrb[0].mxu0
  %3041 = vdwg.mxu0
  %vm3042 = vcmask 1024
  %3043 = vst.msk [vmem:[%s20] sm:$0x3] %vm3042, %v3039
  // Predicated region
  $region82: #{tpu_custom_call.1} parent=0 // pred_check
    _
  $region83: #{tpu_custom_call.1} parent=0 // pred_check_branch
    %3045 = sbr.rel (0) target = $region85
  $region84: #{tpu_custom_call.1} parent=0 // pred_region
    _
  $region85: #{tpu_custom_call.1} parent=0 // pred_fallthru
    _
  // Predicated region
  $region86: #{tpu_custom_call.1} parent=0 // pred_check
    _
  $region87: #{tpu_custom_call.1} parent=0 // pred_check_branch
    %3047 = sbr.rel (0) target = $region89
  $region88: #{tpu_custom_call.1} parent=0 // pred_region
    _
  $region89: #{tpu_custom_call.1} parent=0 // pred_fallthru
    _

</llo_original>
